<compile_context>
chip_gen: v7x
topology: tpu7x:2x2x1
jax: 0.10.0
libtpu: 0.0.40
codegen_flags: <defaults>
</compile_context>

<pallas_src>
import functools

import jax
import jax.numpy as jnp
from jax.experimental import pallas as pl
from jax.experimental.pallas import tpu as pltpu

BN_EPS = 1e-5


# --------------------------------------------------------------------------------------
# Shared conv tile: K accumulating MXU dots on statically-indexed tap blocks.
# --------------------------------------------------------------------------------------
def _conv_tile(xs_ref, w_ref):
    # xs_ref: (K, C_in, TL)  tap-stacked activations, lane-dense along L
    # w_ref:  (K, C_out, C_in)
    k_taps = w_ref.shape[0]
    y = jnp.dot(w_ref[0], xs_ref[0], preferred_element_type=jnp.float32)
    for k in range(1, k_taps):
        y = y + jnp.dot(w_ref[k], xs_ref[k], preferred_element_type=jnp.float32)
    return y  # (C_out, TL) f32


# --------------------------------------------------------------------------------------
# Pass 1: conv recomputed per tile, only per-channel sum / sum-of-squares leave the kernel
# --------------------------------------------------------------------------------------
def conv_stats_kernel(xs_ref, w_ref, sum_ref, sumsq_ref):
    # sum_ref / sumsq_ref: (C_out, 1) per-n resident accumulators across the L grid axis.
    @pl.when(pl.program_id(1) == 0)
    def _():
        sum_ref[...] = jnp.zeros_like(sum_ref)
        sumsq_ref[...] = jnp.zeros_like(sumsq_ref)

    y = _conv_tile(xs_ref, w_ref)
    # Cross-lane reductions -> XLU, off the VPU/MXU critical path.
    sum_ref[...] += jnp.sum(y, axis=-1, keepdims=True)
    sumsq_ref[...] += jnp.sum(y * y, axis=-1, keepdims=True)


# --------------------------------------------------------------------------------------
# Pass 2: conv recomputed per tile, fused per-channel affine (BN) + ReLU, single store
# --------------------------------------------------------------------------------------
def conv_bn_relu_kernel(xs_ref, w_ref, scale_ref, shift_ref, o_ref):
    y = _conv_tile(xs_ref, w_ref)
    y = y * scale_ref[...] + shift_ref[...]
    o_ref[...] = jnp.maximum(y, 0.0).astype(o_ref.dtype)


# --------------------------------------------------------------------------------------
# Generation-aware VMEM limit & tile picker
# --------------------------------------------------------------------------------------
def _vmem_limit_bytes():
    default_cap = 128 * 1024 * 1024
    try:
        info = pltpu.get_tpu_info()
        cap = int(getattr(info, "vmem_capacity_bytes", default_cap))
    except Exception:  # CPU interpret / unknown backend
        cap = default_cap
    # ~25% headroom: v7x (64 MiB) -> 48 MiB, v5e/v6e (128 MiB) -> 96 MiB
    return min((cap * 3) // 4, 96 * 1024 * 1024)


def _pick_l_tile(l_out, c_in, c_out, k_taps, x_itemsize, vmem_limit_bytes):
    # Per-step VMEM (pass 2, the bigger pass): 2x xs block + 2x out block + f32 temporaries.
    budget = vmem_limit_bytes // 2  # keep half for pipelining headroom / compiler scratch
    for t in (2048, 1024, 512, 256, 128):
        if l_out % t != 0:
            continue
        xs_blk = 2 * k_taps * c_in * t * x_itemsize
        out_blk = 2 * c_out * t * 4
        tmp = 3 * c_out * t * 4
        if xs_blk + out_blk + tmp <= budget:
            return t
    return l_out  # small / odd sizes -> single full-L tile


# --------------------------------------------------------------------------------------
# Wrapper
# --------------------------------------------------------------------------------------
@functools.partial(jax.jit, static_argnums=(5,), static_argnames=("mxu_dtype",))
def conv1d_bn_relu(x_ncl, weight_oik, bias_o, gamma_o, beta_o, padding, *,
                   mxu_dtype=jnp.float32):
    """x_ncl: (N, C_in, L) float32, PyTorch NCL layout. Returns (N, C_out, L_out) float32.

    `bias_o` is accepted for interface parity but unused: train-mode BatchNorm's mean
    subtraction cancels the conv bias exactly, so the output is bit-for-bit equivalent.
    mxu_dtype=jnp.bfloat16 halves the HBM traffic for x/W on v5e/v6e/v7x (BN math stays f32).
    """
    del bias_o  # cancelled exactly by train-mode BN

    N, C_in, L = x_ncl.shape
    C_out, _, K = weight_oik.shape
    L_pad = L + 2 * padding
    L_out = L_pad - K + 1

    vmem_limit = _vmem_limit_bytes()
    x_itemsize = jnp.dtype(mxu_dtype).itemsize
    TL = _pick_l_tile(L_out, C_in, C_out, K, x_itemsize, vmem_limit)
    n_l = L_out // TL

    # Cast -> pad -> tap-stack in one fused XLA op chain (stays NCL: L is lane-dense, no
    # transposes anywhere).  xs[n, k, c, j] = x_pad[n, c, j + k].
    x_p = jnp.pad(x_ncl.astype(mxu_dtype), ((0, 0), (0, 0), (padding, padding)))
    xs = jnp.stack([x_p[:, :, k:k + L_out] for k in range(K)], axis=1)  # (N, K, C_in, L_out)

    # (C_out, C_in, K) -> (K, C_out, C_in): static per-tap leading-axis indexing in-kernel.
    w_k = jnp.transpose(weight_oik, (2, 0, 1)).astype(mxu_dtype)

    xs_spec = pl.BlockSpec((None, K, C_in, TL), lambda n, l: (n, 0, 0, l))
    w_spec = pl.BlockSpec((K, C_out, C_in), lambda n, l: (0, 0, 0))
    stat_spec = pl.BlockSpec((None, C_out, 1), lambda n, l: (n, 0, 0))
    sc_spec = pl.BlockSpec((C_out, 1), lambda n, l: (0, 0))
    out_spec = pl.BlockSpec((None, C_out, TL), lambda n, l: (n, 0, l))

    # ---- Pass 1: stats only (N axis "parallel" -> both TCs on v7x; L axis accumulates) ----
    part_sum, part_sumsq = pl.pallas_call(
        conv_stats_kernel,
        grid=(N, n_l),
        in_specs=[xs_spec, w_spec],
        out_specs=(stat_spec, stat_spec),
        out_shape=(
            jax.ShapeDtypeStruct((N, C_out, 1), jnp.float32),
            jax.ShapeDtypeStruct((N, C_out, 1), jnp.float32),
        ),
        compiler_params=pltpu.CompilerParams(
            dimension_semantics=("parallel", "arbitrary"),
            vmem_limit_bytes=vmem_limit,
        ),
    )(xs, w_k)

    # Tiny (C_out,) epilogue in plain JAX: combine per-n partials, fold mean/var/gamma/beta
    # into a single per-channel scale & shift (all f32).
    count = float(N * L_out)
    ch_sum = jnp.sum(part_sum, axis=0)      # (C_out, 1)
    ch_sumsq = jnp.sum(part_sumsq, axis=0)  # (C_out, 1)
    mean = ch_sum / count
    var = jnp.maximum(ch_sumsq / count - mean * mean, 0.0)  # biased var, like torch BN fwd
    inv_std = jax.lax.rsqrt(var + BN_EPS)
    scale = gamma_o.reshape(C_out, 1).astype(jnp.float32) * inv_std
    shift = beta_o.reshape(C_out, 1).astype(jnp.float32) - mean * scale

    # ---- Pass 2: conv recompute + BN + ReLU, fully parallel over (N, L tiles) ----
    out = pl.pallas_call(
        conv_bn_relu_kernel,
        grid=(N, n_l),
        in_specs=[xs_spec, w_spec, sc_spec, sc_spec],
        out_specs=out_spec,
        out_shape=jax.ShapeDtypeStruct((N, C_out, L_out), jnp.float32),
        compiler_params=pltpu.CompilerParams(
            dimension_semantics=("parallel", "parallel"),
            vmem_limit_bytes=vmem_limit,
        ),
    )(xs, w_k, scale, shift)

    return out  # (N, C_out, L_out) -- PyTorch layout, no transposes anywhere


# --------------------------------------------------------------------------------------
# Pure-JAX reference mirroring torch Conv1d + BatchNorm1d(train) + ReLU
# --------------------------------------------------------------------------------------
def reference_jax(x_ncl, weight_oik, bias_o, gamma_o, beta_o, padding):
    N, C_in, L = x_ncl.shape
    C_out, _, K = weight_oik.shape
    L_out = L + 2 * padding - K + 1
    x_pad = jnp.pad(x_ncl, ((0, 0), (0, 0), (padding, padding)))
    y = jnp.zeros((N, C_out, L_out), jnp.float32)
    for k in range(K):
        y = y + jnp.einsum('ncl,oc->nol', x_pad[:, :, k:k + L_out], weight_oik[:, :, k])
    y = y + bias_o[None, :, None]
    mean = jnp.mean(y, axis=(0, 2), keepdims=True)
    var = jnp.mean((y - mean) ** 2, axis=(0, 2), keepdims=True)  # biased, like torch BN fwd
    y = (y - mean) / jnp.sqrt(var + BN_EPS)
    y = y * gamma_o[None, :, None] + beta_o[None, :, None]
    return jnp.maximum(y, 0.0)


if __name__ == "__main__":
    # Small shapes consistent with the module's forward: x is (N, C_in, L)
    N, C_in, C_out, L = 2, 4, 8, 16
    K, padding = 3, 1

    key = jax.random.PRNGKey(0)
    kx, kw, kb, kg, kbeta = jax.random.split(key, 5)

    x = jax.random.normal(kx, (N, C_in, L), jnp.float32)
    fan_in = C_in * K
    bound = 1.0 / (fan_in ** 0.5)
    weight = jax.random.uniform(kw, (C_out, C_in, K), jnp.float32, -bound, bound)
    bias = jax.random.uniform(kb, (C_out,), jnp.float32, -bound, bound)
    gamma = jax.random.uniform(kg, (C_out,), jnp.float32, 0.5, 1.5)
    beta = jax.random.normal(kbeta, (C_out,), jnp.float32) * 0.1

    ref = reference_jax(x, weight, bias, gamma, beta, padding)

    # f32 path: exact semantics of the PyTorch module (train-mode BN)
    out = conv1d_bn_relu(x, weight, bias, gamma, beta, padding)
    out = jax.block_until_ready(out)
    assert out.shape == (N, C_out, L), out.shape
    assert jnp.allclose(out, ref, atol=1e-4, rtol=1e-4), "f32 mismatch vs. reference"

    # bf16 MXU-input path (valid on v5e/v6e/v7x): x/W in bf16, conv accumulation & BN in f32
    out_bf16 = conv1d_bn_relu(x, weight, bias, gamma, beta, padding, mxu_dtype=jnp.bfloat16)
    out_bf16 = jax.block_until_ready(out_bf16)
    assert jnp.allclose(out_bf16, ref, atol=5e-2, rtol=5e-2), "bf16 mismatch vs. reference"

    print("KERNEL_OK")
</pallas_src>

<mosaic_0001>
module attributes {stable_mosaic.version = 11 : i64} {
  func.func @conv_stats_kernel(%arg0: i32, %arg1: i32, %arg2: memref<1x3x4x16xf32, #tpu.memory_space<vmem>>, %arg3: memref<3x8x4xf32, #tpu.memory_space<vmem>>, %arg4: memref<1x8x1xf32, #tpu.memory_space<vmem>>, %arg5: memref<1x8x1xf32, #tpu.memory_space<vmem>>) attributes {dimension_semantics = [#tpu.dimension_semantics<parallel>, #tpu.dimension_semantics<arbitrary>], iteration_bounds = array<i64: 2, 1>, scalar_prefetch = 0 : i64, scratch_operands = 0 : i64, tpu.core_type = #tpu.core_type<tc>, window_params = [{transform_indices = @transform_0, window_bounds = array<i64: 1, 3, 4, 16>}, {pipeline_mode = #tpu.pipeline_mode<synchronous>, transform_indices = @transform_1, window_bounds = array<i64: 3, 8, 4>}, {transform_indices = @transform_2, window_bounds = array<i64: 1, 8, 1>}, {transform_indices = @transform_3, window_bounds = array<i64: 1, 8, 1>}]} {
    %c0_i32 = arith.constant 0 : i32
    %0 = arith.cmpi eq, %arg1, %c0_i32 : i32
    %1 = arith.extui %0 : i1 to i32
    %c0_i32_0 = arith.constant 0 : i32
    %2 = arith.cmpi ne, %1, %c0_i32_0 : i32
    scf.if %2 {
      %cst_35 = arith.constant 0.000000e+00 : f32
      %37 = vector.broadcast %cst_35 : f32 to vector<8x1xf32>
      %c0_36 = arith.constant 0 : index
      %c0_37 = arith.constant 0 : index
      %c0_38 = arith.constant 0 : index
      %38 = vector.load %arg4[%c0_36, %c0_37, %c0_38] : memref<1x8x1xf32, #tpu.memory_space<vmem>>, vector<1x8x1xf32>
      %39 = vector.shape_cast %38 : vector<1x8x1xf32> to vector<8x1xf32>
      %40 = vector.shape_cast %37 : vector<8x1xf32> to vector<1x8x1xf32>
      tpu.vector_store %arg4[%c0_36, %c0_37, %c0_38], %40 {strides = array<i32>} : memref<1x8x1xf32, #tpu.memory_space<vmem>>, vector<1x8x1xf32>,
      %cst_39 = arith.constant 0.000000e+00 : f32
      %41 = vector.broadcast %cst_39 : f32 to vector<8x1xf32>
      %c0_40 = arith.constant 0 : index
      %c0_41 = arith.constant 0 : index
      %c0_42 = arith.constant 0 : index
      %42 = vector.load %arg5[%c0_40, %c0_41, %c0_42] : memref<1x8x1xf32, #tpu.memory_space<vmem>>, vector<1x8x1xf32>
      %43 = vector.shape_cast %42 : vector<1x8x1xf32> to vector<8x1xf32>
      %44 = vector.shape_cast %41 : vector<8x1xf32> to vector<1x8x1xf32>
      tpu.vector_store %arg5[%c0_40, %c0_41, %c0_42], %44 {strides = array<i32>} : memref<1x8x1xf32, #tpu.memory_space<vmem>>, vector<1x8x1xf32>,
    } else {
    }
    %c0 = arith.constant 0 : index
    %c0_1 = arith.constant 0 : index
    %c0_2 = arith.constant 0 : index
    %3 = vector.load %arg3[%c0, %c0_1, %c0_2] : memref<3x8x4xf32, #tpu.memory_space<vmem>>, vector<1x8x4xf32>
    %4 = vector.shape_cast %3 : vector<1x8x4xf32> to vector<8x4xf32>
    %c0_3 = arith.constant 0 : index
    %c0_4 = arith.constant 0 : index
    %c0_5 = arith.constant 0 : index
    %c0_6 = arith.constant 0 : index
    %5 = vector.load %arg2[%c0_3, %c0_4, %c0_5, %c0_6] : memref<1x3x4x16xf32, #tpu.memory_space<vmem>>, vector<1x1x4x16xf32>
    %6 = vector.shape_cast %5 : vector<1x1x4x16xf32> to vector<4x16xf32>
    %cst = arith.constant dense<0.000000e+00> : vector<8x16xf32>
    %7 = tpu.matmul %4, %6, %cst {dimension_numbers = #tpu.dot_dimension_numbers<[1], [0], [0], [1], [0, 0, 1, 1], [], []>} : vector<8x4xf32>, vector<4x16xf32>, vector<8x16xf32> -> vector<8x16xf32>
    %c1 = arith.constant 1 : index
    %c0_7 = arith.constant 0 : index
    %c0_8 = arith.constant 0 : index
    %8 = vector.load %arg3[%c1, %c0_7, %c0_8] : memref<3x8x4xf32, #tpu.memory_space<vmem>>, vector<1x8x4xf32>
    %9 = vector.shape_cast %8 : vector<1x8x4xf32> to vector<8x4xf32>
    %c0_9 = arith.constant 0 : index
    %c1_10 = arith.constant 1 : index
    %c0_11 = arith.constant 0 : index
    %c0_12 = arith.constant 0 : index
    %10 = vector.load %arg2[%c0_9, %c1_10, %c0_11, %c0_12] : memref<1x3x4x16xf32, #tpu.memory_space<vmem>>, vector<1x1x4x16xf32>
    %11 = vector.shape_cast %10 : vector<1x1x4x16xf32> to vector<4x16xf32>
    %cst_13 = arith.constant dense<0.000000e+00> : vector<8x16xf32>
    %12 = tpu.matmul %9, %11, %cst_13 {dimension_numbers = #tpu.dot_dimension_numbers<[1], [0], [0], [1], [0, 0, 1, 1], [], []>} : vector<8x4xf32>, vector<4x16xf32>, vector<8x16xf32> -> vector<8x16xf32>
    %13 = arith.addf %7, %12 : vector<8x16xf32>
    %c2 = arith.constant 2 : index
    %c0_14 = arith.constant 0 : index
    %c0_15 = arith.constant 0 : index
    %14 = vector.load %arg3[%c2, %c0_14, %c0_15] : memref<3x8x4xf32, #tpu.memory_space<vmem>>, vector<1x8x4xf32>
    %15 = vector.shape_cast %14 : vector<1x8x4xf32> to vector<8x4xf32>
    %c0_16 = arith.constant 0 : index
    %c2_17 = arith.constant 2 : index
    %c0_18 = arith.constant 0 : index
    %c0_19 = arith.constant 0 : index
    %16 = vector.load %arg2[%c0_16, %c2_17, %c0_18, %c0_19] : memref<1x3x4x16xf32, #tpu.memory_space<vmem>>, vector<1x1x4x16xf32>
    %17 = vector.shape_cast %16 : vector<1x1x4x16xf32> to vector<4x16xf32>
    %cst_20 = arith.constant dense<0.000000e+00> : vector<8x16xf32>
    %18 = tpu.matmul %15, %17, %cst_20 {dimension_numbers = #tpu.dot_dimension_numbers<[1], [0], [0], [1], [0, 0, 1, 1], [], []>} : vector<8x4xf32>, vector<4x16xf32>, vector<8x16xf32> -> vector<8x16xf32>
    %19 = arith.addf %13, %18 : vector<8x16xf32>
    %c0_21 = arith.constant 0 : index
    %c0_22 = arith.constant 0 : index
    %c0_23 = arith.constant 0 : index
    %20 = vector.load %arg4[%c0_21, %c0_22, %c0_23] : memref<1x8x1xf32, #tpu.memory_space<vmem>>, vector<1x8x1xf32>
    %21 = vector.shape_cast %20 : vector<1x8x1xf32> to vector<8x1xf32>
    %cst_24 = arith.constant dense<0.000000e+00> : vector<8xf32>
    %22 = vector.multi_reduction <add>, %19, %cst_24 [1] : vector<8x16xf32> to vector<8xf32>
    %23 = vector.shape_cast %22 : vector<8xf32> to vector<8x1xf32>
    %24 = arith.addf %21, %23 : vector<8x1xf32>
    %c0_25 = arith.constant 0 : index
    %c0_26 = arith.constant 0 : index
    %c0_27 = arith.constant 0 : index
    %25 = vector.load %arg4[%c0_25, %c0_26, %c0_27] : memref<1x8x1xf32, #tpu.memory_space<vmem>>, vector<1x8x1xf32>
    %26 = vector.shape_cast %25 : vector<1x8x1xf32> to vector<8x1xf32>
    %27 = vector.shape_cast %24 : vector<8x1xf32> to vector<1x8x1xf32>
    tpu.vector_store %arg4[%c0_25, %c0_26, %c0_27], %27 {strides = array<i32>} : memref<1x8x1xf32, #tpu.memory_space<vmem>>, vector<1x8x1xf32>,
    %c0_28 = arith.constant 0 : index
    %c0_29 = arith.constant 0 : index
    %c0_30 = arith.constant 0 : index
    %28 = vector.load %arg5[%c0_28, %c0_29, %c0_30] : memref<1x8x1xf32, #tpu.memory_space<vmem>>, vector<1x8x1xf32>
    %29 = vector.shape_cast %28 : vector<1x8x1xf32> to vector<8x1xf32>
    %30 = arith.mulf %19, %19 : vector<8x16xf32>
    %cst_31 = arith.constant dense<0.000000e+00> : vector<8xf32>
    %31 = vector.multi_reduction <add>, %30, %cst_31 [1] : vector<8x16xf32> to vector<8xf32>
    %32 = vector.shape_cast %31 : vector<8xf32> to vector<8x1xf32>
    %33 = arith.addf %29, %32 : vector<8x1xf32>
    %c0_32 = arith.constant 0 : index
    %c0_33 = arith.constant 0 : index
    %c0_34 = arith.constant 0 : index
    %34 = vector.load %arg5[%c0_32, %c0_33, %c0_34] : memref<1x8x1xf32, #tpu.memory_space<vmem>>, vector<1x8x1xf32>
    %35 = vector.shape_cast %34 : vector<1x8x1xf32> to vector<8x1xf32>
    %36 = vector.shape_cast %33 : vector<8x1xf32> to vector<1x8x1xf32>
    tpu.vector_store %arg5[%c0_32, %c0_33, %c0_34], %36 {strides = array<i32>} : memref<1x8x1xf32, #tpu.memory_space<vmem>>, vector<1x8x1xf32>,
    return
  }
  func.func @transform_0(%arg0: i32, %arg1: i32) -> (i32, i32, i32, i32) {
    %c0_i32 = arith.constant 0 : i32
    %c0_i32_0 = arith.constant 0 : i32
    %c0_i32_1 = arith.constant 0 : i32
    return %arg0, %c0_i32, %c0_i32_0, %arg1 : i32, i32, i32, i32
  }
  func.func @transform_1(%arg0: i32, %arg1: i32) -> (i32, i32, i32) {
    %c0_i32 = arith.constant 0 : i32
    %c0_i32_0 = arith.constant 0 : i32
    %c0_i32_1 = arith.constant 0 : i32
    %c0_i32_2 = arith.constant 0 : i32
    return %c0_i32, %c0_i32_0, %c0_i32_1 : i32, i32, i32
  }
  func.func @transform_2(%arg0: i32, %arg1: i32) -> (i32, i32, i32) {
    %c0_i32 = arith.constant 0 : i32
    %c0_i32_0 = arith.constant 0 : i32
    %c0_i32_1 = arith.constant 0 : i32
    return %arg0, %c0_i32, %c0_i32_0 : i32, i32, i32
  }
  func.func @transform_3(%arg0: i32, %arg1: i32) -> (i32, i32, i32) {
    %c0_i32 = arith.constant 0 : i32
    %c0_i32_0 = arith.constant 0 : i32
    %c0_i32_1 = arith.constant 0 : i32
    return %arg0, %c0_i32, %c0_i32_0 : i32, i32, i32
  }
}

module attributes {stable_mosaic.version = 11 : i64} {
  func.func @conv_bn_relu_kernel(%arg0: i32, %arg1: i32, %arg2: memref<1x3x4x16xf32, #tpu.memory_space<vmem>>, %arg3: memref<3x8x4xf32, #tpu.memory_space<vmem>>, %arg4: memref<8x1xf32, #tpu.memory_space<vmem>>, %arg5: memref<8x1xf32, #tpu.memory_space<vmem>>, %arg6: memref<1x8x16xf32, #tpu.memory_space<vmem>>) attributes {dimension_semantics = [#tpu.dimension_semantics<parallel>, #tpu.dimension_semantics<parallel>], iteration_bounds = array<i64: 2, 1>, scalar_prefetch = 0 : i64, scratch_operands = 0 : i64, tpu.core_type = #tpu.core_type<tc>, window_params = [{transform_indices = @transform_0, window_bounds = array<i64: 1, 3, 4, 16>}, {pipeline_mode = #tpu.pipeline_mode<synchronous>, transform_indices = @transform_1, window_bounds = array<i64: 3, 8, 4>}, {pipeline_mode = #tpu.pipeline_mode<synchronous>, transform_indices = @transform_2, window_bounds = array<i64: 8, 1>}, {pipeline_mode = #tpu.pipeline_mode<synchronous>, transform_indices = @transform_3, window_bounds = array<i64: 8, 1>}, {transform_indices = @transform_4, window_bounds = array<i64: 1, 8, 16>}]} {
    %c0 = arith.constant 0 : index
    %c0_0 = arith.constant 0 : index
    %c0_1 = arith.constant 0 : index
    %0 = vector.load %arg3[%c0, %c0_0, %c0_1] : memref<3x8x4xf32, #tpu.memory_space<vmem>>, vector<1x8x4xf32>
    %1 = vector.shape_cast %0 : vector<1x8x4xf32> to vector<8x4xf32>
    %c0_2 = arith.constant 0 : index
    %c0_3 = arith.constant 0 : index
    %c0_4 = arith.constant 0 : index
    %c0_5 = arith.constant 0 : index
    %2 = vector.load %arg2[%c0_2, %c0_3, %c0_4, %c0_5] : memref<1x3x4x16xf32, #tpu.memory_space<vmem>>, vector<1x1x4x16xf32>
    %3 = vector.shape_cast %2 : vector<1x1x4x16xf32> to vector<4x16xf32>
    %cst = arith.constant dense<0.000000e+00> : vector<8x16xf32>
    %4 = tpu.matmul %1, %3, %cst {dimension_numbers = #tpu.dot_dimension_numbers<[1], [0], [0], [1], [0, 0, 1, 1], [], []>} : vector<8x4xf32>, vector<4x16xf32>, vector<8x16xf32> -> vector<8x16xf32>
    %c1 = arith.constant 1 : index
    %c0_6 = arith.constant 0 : index
    %c0_7 = arith.constant 0 : index
    %5 = vector.load %arg3[%c1, %c0_6, %c0_7] : memref<3x8x4xf32, #tpu.memory_space<vmem>>, vector<1x8x4xf32>
    %6 = vector.shape_cast %5 : vector<1x8x4xf32> to vector<8x4xf32>
    %c0_8 = arith.constant 0 : index
    %c1_9 = arith.constant 1 : index
    %c0_10 = arith.constant 0 : index
    %c0_11 = arith.constant 0 : index
    %7 = vector.load %arg2[%c0_8, %c1_9, %c0_10, %c0_11] : memref<1x3x4x16xf32, #tpu.memory_space<vmem>>, vector<1x1x4x16xf32>
    %8 = vector.shape_cast %7 : vector<1x1x4x16xf32> to vector<4x16xf32>
    %cst_12 = arith.constant dense<0.000000e+00> : vector<8x16xf32>
    %9 = tpu.matmul %6, %8, %cst_12 {dimension_numbers = #tpu.dot_dimension_numbers<[1], [0], [0], [1], [0, 0, 1, 1], [], []>} : vector<8x4xf32>, vector<4x16xf32>, vector<8x16xf32> -> vector<8x16xf32>
    %10 = arith.addf %4, %9 : vector<8x16xf32>
    %c2 = arith.constant 2 : index
    %c0_13 = arith.constant 0 : index
    %c0_14 = arith.constant 0 : index
    %11 = vector.load %arg3[%c2, %c0_13, %c0_14] : memref<3x8x4xf32, #tpu.memory_space<vmem>>, vector<1x8x4xf32>
    %12 = vector.shape_cast %11 : vector<1x8x4xf32> to vector<8x4xf32>
    %c0_15 = arith.constant 0 : index
    %c2_16 = arith.constant 2 : index
    %c0_17 = arith.constant 0 : index
    %c0_18 = arith.constant 0 : index
    %13 = vector.load %arg2[%c0_15, %c2_16, %c0_17, %c0_18] : memref<1x3x4x16xf32, #tpu.memory_space<vmem>>, vector<1x1x4x16xf32>
    %14 = vector.shape_cast %13 : vector<1x1x4x16xf32> to vector<4x16xf32>
    %cst_19 = arith.constant dense<0.000000e+00> : vector<8x16xf32>
    %15 = tpu.matmul %12, %14, %cst_19 {dimension_numbers = #tpu.dot_dimension_numbers<[1], [0], [0], [1], [0, 0, 1, 1], [], []>} : vector<8x4xf32>, vector<4x16xf32>, vector<8x16xf32> -> vector<8x16xf32>
    %16 = arith.addf %10, %15 : vector<8x16xf32>
    %c0_20 = arith.constant 0 : index
    %c0_21 = arith.constant 0 : index
    %17 = vector.load %arg4[%c0_20, %c0_21] : memref<8x1xf32, #tpu.memory_space<vmem>>, vector<8x1xf32>
    %18 = vector.broadcast %17 : vector<8x1xf32> to vector<8x16xf32>
    %19 = arith.mulf %16, %18 : vector<8x16xf32>
    %c0_22 = arith.constant 0 : index
    %c0_23 = arith.constant 0 : index
    %20 = vector.load %arg5[%c0_22, %c0_23] : memref<8x1xf32, #tpu.memory_space<vmem>>, vector<8x1xf32>
    %21 = vector.broadcast %20 : vector<8x1xf32> to vector<8x16xf32>
    %22 = arith.addf %19, %21 : vector<8x16xf32>
    %cst_24 = arith.constant 0.000000e+00 : f32
    %23 = vector.broadcast %cst_24 : f32 to vector<8x16xf32>
    %24 = arith.maximumf %22, %23 : vector<8x16xf32>
    %c0_25 = arith.constant 0 : index
    %c0_26 = arith.constant 0 : index
    %c0_27 = arith.constant 0 : index
    %25 = vector.load %arg6[%c0_25, %c0_26, %c0_27] : memref<1x8x16xf32, #tpu.memory_space<vmem>>, vector<1x8x16xf32>
    %26 = vector.shape_cast %25 : vector<1x8x16xf32> to vector<8x16xf32>
    %27 = vector.shape_cast %24 : vector<8x16xf32> to vector<1x8x16xf32>
    tpu.vector_store %arg6[%c0_25, %c0_26, %c0_27], %27 {strides = array<i32>} : memref<1x8x16xf32, #tpu.memory_space<vmem>>, vector<1x8x16xf32>,
    return
  }
  func.func @transform_0(%arg0: i32, %arg1: i32) -> (i32, i32, i32, i32) {
    %c0_i32 = arith.constant 0 : i32
    %c0_i32_0 = arith.constant 0 : i32
    %c0_i32_1 = arith.constant 0 : i32
    return %arg0, %c0_i32, %c0_i32_0, %arg1 : i32, i32, i32, i32
  }
  func.func @transform_1(%arg0: i32, %arg1: i32) -> (i32, i32, i32) {
    %c0_i32 = arith.constant 0 : i32
    %c0_i32_0 = arith.constant 0 : i32
    %c0_i32_1 = arith.constant 0 : i32
    %c0_i32_2 = arith.constant 0 : i32
    return %c0_i32, %c0_i32_0, %c0_i32_1 : i32, i32, i32
  }
  func.func @transform_2(%arg0: i32, %arg1: i32) -> (i32, i32) {
    %c0_i32 = arith.constant 0 : i32
    %c0_i32_0 = arith.constant 0 : i32
    %c0_i32_1 = arith.constant 0 : i32
    return %c0_i32, %c0_i32_0 : i32, i32
  }
  func.func @transform_3(%arg0: i32, %arg1: i32) -> (i32, i32) {
    %c0_i32 = arith.constant 0 : i32
    %c0_i32_0 = arith.constant 0 : i32
    %c0_i32_1 = arith.constant 0 : i32
    return %c0_i32, %c0_i32_0 : i32, i32
  }
  func.func @transform_4(%arg0: i32, %arg1: i32) -> (i32, i32, i32) {
    %c0_i32 = arith.constant 0 : i32
    %c0_i32_0 = arith.constant 0 : i32
    return %arg0, %c0_i32, %arg1 : i32, i32, i32
  }
}

</mosaic_0001>

<llo_original>
// kernel: conv1d_bn_relu.2
$region0: #{conv1d_bn_relu.2}
  #allocation0 [shape = 'u32[]', space=smem, size = 0x4, offset = 0x4, fixed_abs, tag = 'smem constant byte address 0x4 - core index']
  #allocation1 [shape = 'u32[144,128]{1,0:T(1,128)}', space=vmem, size = 0x12000, scoped, tag = 'internal scratch']
  %s0 = inlined_call_operand.hbm [shape: f32[2,3,4,16], index: 0, kind: input, shape index: {}]
  %s1 = inlined_call_operand.hbm [shape: f32[3,8,4], index: 1, kind: input, shape index: {}]
  %s2 = inlined_call_operand.hbm [shape: f32[2,8,1], index: 2, kind: output, shape index: {0}]
  %s3 = inlined_call_operand.hbm [shape: f32[2,8,1], index: 3, kind: output, shape index: {1}]
  %4 = xla_tuple %s2, %s3
  %s5 = sld [smem:[#allocation0]]
  $region61: #{conv1d_bn_relu.2} parent=0
    _
  %s7 = ssub.s32 1, %s5
  %s8 = scalar_select 0, %s7, %s5
  $region1: #{conv1d_bn_relu.2} parent=0
    #allocation2 [shape = 'u8[12288]{0}', space=vmem, size = 0x3000, scoped, tag = 'input window, operand 0']
    #allocation3 [shape = 's32[2]{0}', space=sflag, size = 0x8, scoped, tag = 'scoped memory for conv1d_bn_relu.2']
    #allocation4 [shape = 's32[2]{0}', space=sflag, size = 0x8, scoped, tag = 'scoped memory for conv1d_bn_relu.2']
    #allocation5 [shape = 'u8[12288]{0}', space=vmem, size = 0x3000, scoped, tag = 'input window, operand 1, single buffered']
    #allocation6 [shape = 's32[1]{0}', space=sflag, size = 0x4, scoped, tag = 'scoped memory for conv1d_bn_relu.2']
    #allocation7 [shape = 'u8[8192]{0}', space=vmem, size = 0x2000, scoped, tag = 'output window, operand 0']
    #allocation8 [shape = 'u8[8192]{0}', space=vmem, size = 0x2000, scoped, tag = 'output window, operand 1']
    #allocation9 [shape = 's32[2]{0}', space=sflag, size = 0x8, scoped, tag = 'scoped memory for conv1d_bn_relu.2']
    %9 = vsyncpa [#allocation3], 0
    %s10 = scalar_lea.sflag [#allocation3], 1
    %11 = vsyncpa %s10, 0
    %12 = vsyncpa [#allocation6], 0
    %13 = vsyncpa [#allocation4], 0
    %s14 = scalar_lea.sflag [#allocation4], 1
    %15 = vsyncpa %s14, 0
    %16 = vsyncpa [#allocation9], 0
    %s17 = scalar_lea.sflag [#allocation9], 1
    %18 = vsyncpa %s17, 0
    loop: start=0, step=1, limit=4
    $region2: #{conv1d_bn_relu.2} parent=1 // loop_pre_header
      _
    $region3: #{conv1d_bn_relu.2} parent=1 // loop_header
      %s20 = sphi 0, %s24
      %p21 = scmp.ge.s32.totalorder %s20, 4
      %s27 = sphi 0, %s39
      %s28 = sphi 0, %s35
      %s29 = sphi 0, %s27
      %s30 = sphi 0, %s28
      %s31 = sphi 0, %s29
      %s32 = sphi 0, %s30
      %s44 = sphi 0, %s46
      %s47 = sphi 0, %s44
      %s48 = sphi 0, %s47
      %s64 = sphi 0, %s48
      %s68 = sphi 0, %s68
      %s70 = sphi 0, %s68
      %s71 = sphi 0, %s70
      %s85 = sphi 0, %s71
      %s91 = sphi 0, %s93
      %s94 = sphi 0, %s91
      %s95 = sphi 0, %s94
      %s111 = sphi 0, %s95
      %s117 = sphi 0, %s119
      %s120 = sphi 0, %s117
      %s121 = sphi 0, %s120
      %s137 = sphi 0, %s121
    $region4: #{conv1d_bn_relu.2} parent=1 // loop_header_branch
      %23 = sbr.rel (%p21) target = $region8
    $region5: #{conv1d_bn_relu.2} parent=1 // loop_body
      %s25 = ssub.s32 %s20, 1
      %s26 = ssub.s32 %s20, 2
      %s33 = sadd.s32 1, %s28
      %p34 = scmp.ge.s32.totalorder %s33, 1
      %s35 = scalar_select %p34, 0, %s33
      %s36 = sadd.s32 1, %s27
      %s37 = scalar_select %p34, %s36, %s27
      %p38 = scmp.ge.s32.totalorder %s37, 2
      %s39 = scalar_select %p38, 0, %s37
      %s40 = ssub.s32 %s27, %s39
      %s41 = ssub.s32 %s28, %s35
      %s42 = sor.u32 %s40, %s41
      %p43 = scmp.eq.s32.totalorder %s42, 0
      %s45 = sadd.s32 %s44, 1
      %s46 = scalar_select %p43, %s44, %s45
      %p49 = pneg %p43
      %p50 = scmp.eq.s32.totalorder %s20, 1
      %p51 = por %p49, %p50
      %p52 = scmp.ne.s32.totalorder %s44, %s47
      %p53 = scmp.eq.s32.totalorder %s20, 0
      %p54 = por %p52, %p53
      %p55 = scmp.ne.s32.totalorder %s44, %s47
      %p56 = scmp.eq.s32.totalorder %s25, 1
      %p57 = por %p55, %p56
      %p58 = scmp.ne.s32.totalorder %s47, %s48
      %p59 = scmp.eq.s32.totalorder %s25, 0
      %p60 = por %p58, %p59
      %p61 = scmp.ne.s32.totalorder %s47, %s48
      %p62 = scmp.eq.s32.totalorder %s26, 1
      %p63 = por %p61, %p62
      %p65 = scmp.ne.s32.totalorder %s48, %s64
      %p66 = scmp.eq.s32.totalorder %s26, 0
      %p67 = por %p65, %p66
      %s69 = sadd.s32 %s68, 1
      %p72 = scmp.eq.s32.totalorder %s20, 1
      %p73 = scmp.ne.s32.totalorder %s68, %s70
      %p74 = scmp.eq.s32.totalorder %s20, 0
      %p75 = por %p73, %p74
      %p76 = scmp.ne.s32.totalorder %s68, %s70
      %p77 = scmp.eq.s32.totalorder %s25, 1
      %p78 = por %p76, %p77
      %p79 = scmp.ne.s32.totalorder %s70, %s71
      %p80 = scmp.eq.s32.totalorder %s25, 0
      %p81 = por %p79, %p80
      %p82 = scmp.ne.s32.totalorder %s70, %s71
      %p83 = scmp.eq.s32.totalorder %s26, 1
      %p84 = por %p82, %p83
      %p86 = scmp.ne.s32.totalorder %s71, %s85
      %p87 = scmp.eq.s32.totalorder %s26, 0
      %p88 = por %p86, %p87
      %s89 = ssub.s32 %s27, %s39
      %p90 = scmp.eq.s32.totalorder %s89, 0
      %s92 = sadd.s32 %s91, 1
      %s93 = scalar_select %p90, %s91, %s92
      %p96 = pneg %p90
      %p97 = scmp.eq.s32.totalorder %s20, 1
      %p98 = por %p96, %p97
      %p99 = scmp.ne.s32.totalorder %s91, %s94
      %p100 = scmp.eq.s32.totalorder %s20, 0
      %p101 = por %p99, %p100
      %p102 = scmp.ne.s32.totalorder %s91, %s94
      %p103 = scmp.eq.s32.totalorder %s25, 1
      %p104 = por %p102, %p103
      %p105 = scmp.ne.s32.totalorder %s94, %s95
      %p106 = scmp.eq.s32.totalorder %s25, 0
      %p107 = por %p105, %p106
      %p108 = scmp.ne.s32.totalorder %s94, %s95
      %p109 = scmp.eq.s32.totalorder %s26, 1
      %p110 = por %p108, %p109
      %p112 = scmp.ne.s32.totalorder %s95, %s111
      %p113 = scmp.eq.s32.totalorder %s26, 0
      %p114 = por %p112, %p113
      %s115 = ssub.s32 %s27, %s39
      %p116 = scmp.eq.s32.totalorder %s115, 0
      %s118 = sadd.s32 %s117, 1
      %s119 = scalar_select %p116, %s117, %s118
      %p122 = pneg %p116
      %p123 = scmp.eq.s32.totalorder %s20, 1
      %p124 = por %p122, %p123
      %p125 = scmp.ne.s32.totalorder %s117, %s120
      %p126 = scmp.eq.s32.totalorder %s20, 0
      %p127 = por %p125, %p126
      %p128 = scmp.ne.s32.totalorder %s117, %s120
      %p129 = scmp.eq.s32.totalorder %s25, 1
      %p130 = por %p128, %p129
      %p131 = scmp.ne.s32.totalorder %s120, %s121
      %p132 = scmp.eq.s32.totalorder %s25, 0
      %p133 = por %p131, %p132
      %p134 = scmp.ne.s32.totalorder %s120, %s121
      %p135 = scmp.eq.s32.totalorder %s26, 1
      %p136 = por %p134, %p135
      %p138 = scmp.ne.s32.totalorder %s121, %s137
      %p139 = scmp.eq.s32.totalorder %s26, 0
      %p140 = por %p138, %p139
      %p141 = scmp.le.s32.totalorder 1, %s20
      %p142 = scmp.lt.s32.totalorder %s20, 3
      %p143 = pnand %p141, %p142
      %p144 = pneg %p143
      // Predicated region
      $region9: #{conv1d_bn_relu.2} parent=5 // pred_check
        _
      $region10: #{conv1d_bn_relu.2} parent=5 // pred_check_branch
        %146 = sbr.rel (%p143) target = $region12
      $region11: #{conv1d_bn_relu.2} parent=5 // pred_region
        %s147 = ssub.s32 %s20, 1
        // Predicated region
        $region13: #{conv1d_bn_relu.2} parent=11 // pred_check
          %p148 = pneg %p81
        $region14: #{conv1d_bn_relu.2} parent=11 // pred_check_branch
          %150 = sbr.rel (%p148) target = $region16
        $region15: #{conv1d_bn_relu.2} parent=11 // pred_region
          %s152 = ssub.s32 384, 384
          %153 = vsyncadd [#allocation6], %s152
          %s154 = sshll.u32 [#allocation5], 4
          %s155 = int_to_ptr.vmem [resolvable:$true] %s154
          %160 = dma.hbm_to_vmem [thread:$0]  %s1, 384, %s155, [#allocation6], 128, 128, 8
        $region16: #{conv1d_bn_relu.2} parent=11 // pred_fallthru
          _
      $region12: #{conv1d_bn_relu.2} parent=5 // pred_fallthru
        _
      %p161 = scmp.lt.s32.totalorder %s20, 2
      // Predicated region
      $region17: #{conv1d_bn_relu.2} parent=5 // pred_check
        %p162 = pneg %p161
      $region18: #{conv1d_bn_relu.2} parent=5 // pred_check_branch
        %164 = sbr.rel (%p162) target = $region20
      $region19: #{conv1d_bn_relu.2} parent=5 // pred_region
        // Predicated region
        $region21: #{conv1d_bn_relu.2} parent=19 // pred_check
          %p165 = pneg %p54
        $region22: #{conv1d_bn_relu.2} parent=19 // pred_check_branch
          %167 = sbr.rel (%p165) target = $region24
        $region23: #{conv1d_bn_relu.2} parent=19 // pred_region
          %s168 = sand.u32 %s44, 1
          %s169 = scalar_lea.sflag [#allocation3], %s168
          %s170 = sand.u32 %s44, 1
          %s171 = smul.addr %s170, 12
          %s172 = scalar_lea.vmem [#allocation2], %s171
          %s174 = ssub.s32 192, 192
          %175 = vsyncadd %s169, %s174
          %s176 = smul.addr %s27, 3
          %s177 = sadd.s32 %s28, %s176
          %s178 = smul.addr %s177, 64
          %s179 = scalar_lea.hbm %s0, %s178
          %s180 = sshll.u32 %s172, 4
          %s181 = int_to_ptr.vmem [resolvable:$true] %s180
          %186 = dma.hbm_to_vmem [thread:$0]  %s179, 192, %s181, %s169, 64, 64, 4
        $region24: #{conv1d_bn_relu.2} parent=19 // pred_fallthru
          _
      $region20: #{conv1d_bn_relu.2} parent=5 // pred_fallthru
        _
      %p187 = scmp.le.s32.totalorder 1, %s20
      %p188 = scmp.lt.s32.totalorder %s20, 3
      %p189 = pnand %p187, %p188
      %p190 = pneg %p189
      // Predicated region
      $region25: #{conv1d_bn_relu.2} parent=5 // pred_check
        _
      $region26: #{conv1d_bn_relu.2} parent=5 // pred_check_branch
        %192 = sbr.rel (%p189) target = $region28
      $region27: #{conv1d_bn_relu.2} parent=5 // pred_region
        %s193 = ssub.s32 %s20, 1
        %s194 = sand.u32 %s47, 1
        %s195 = scalar_lea.sflag [#allocation3], %s194
        %s196 = sand.u32 %s47, 1
        %s197 = smul.addr %s196, 12
        %s198 = scalar_lea.vmem [#allocation2], %s197
        // Predicated region
        $region29: #{conv1d_bn_relu.2} parent=27 // pred_check
          %p199 = pneg %p60
        $region30: #{conv1d_bn_relu.2} parent=27 // pred_check_branch
          %201 = sbr.rel (%p199) target = $region32
        $region31: #{conv1d_bn_relu.2} parent=27 // pred_region
          %202 = dma.done %s195, 192
        $region32: #{conv1d_bn_relu.2} parent=27 // pred_fallthru
          _
        // Predicated region
        $region33: #{conv1d_bn_relu.2} parent=27 // pred_check
          %p203 = pneg %p81
        $region34: #{conv1d_bn_relu.2} parent=27 // pred_check_branch
          %205 = sbr.rel (%p203) target = $region36
        $region35: #{conv1d_bn_relu.2} parent=27 // pred_region
          %206 = dma.done [#allocation6], 384
        $region36: #{conv1d_bn_relu.2} parent=27 // pred_fallthru
          _
        %s207 = sand.u32 %s47, 1
        %s208 = scalar_lea.sflag [#allocation3], %s207
        %s209 = sand.u32 %s47, 1
        %s210 = smul.addr %s209, 12
        %s211 = scalar_lea.vmem [#allocation2], %s210
        %p212 = pneg %p60
        %p213 = pneg %p57
        %p214 = pneg %p81
        %p215 = pneg %p78
        %p216 = pneg %p107
        %p217 = pneg %p104
        %s218 = sand.u32 %s94, 1
        %s219 = scalar_lea.sflag [#allocation4], %s218
        %s220 = sand.u32 %s94, 1
        %s221 = smul.addr %s220, 8
        %s222 = scalar_lea.vmem [#allocation7], %s221
        %p223 = pneg %p133
        %p224 = pneg %p130
        %s225 = sand.u32 %s120, 1
        %s226 = scalar_lea.sflag [#allocation9], %s225
        %s227 = sand.u32 %s120, 1
        %s228 = smul.addr %s227, 8
        %s229 = scalar_lea.vmem [#allocation8], %s228
        %p230 = scmp.eq.s32.totalorder %s30, 0
        // Predicated region
        $region37: #{conv1d_bn_relu.2} parent=27 // pred_check
          %p231 = pneg %p230
        $region38: #{conv1d_bn_relu.2} parent=27 // pred_check_branch
          %233 = sbr.rel (%p231) target = $region40
        $region39: #{conv1d_bn_relu.2} parent=27 // pred_region
          %vm234 = vcmask 7168
          %235 = vst.msk [vmem:[%s222] sm:$0xff] %vm234, 0.0
          %236 = vst.msk [vmem:[%s229] sm:$0xff] %vm234, 0.0
        $region40: #{conv1d_bn_relu.2} parent=27 // pred_fallthru
          _
        %v237 = vld [vmem:[#allocation5] sm:$0xff]
        %v238 = vld [vmem:[%s198] sm:$0xf]
        %s239 = scalar_lea.vmem [#allocation5], 8
        %v240 = vld [vmem:[%s239] sm:$0xff]
        %s241 = scalar_lea.vmem %s198, 4 [#allocation2]
        %v242 = vld [vmem:[%s241] sm:$0xf]
        %vm243 = vcmask 31744
        %v245 = vsel %vm243, %v240, 0
        %vm247 = vcmask 1043456
        %v249 = vsel %vm247, %v242, 0
        %251 = vmatprep.subr.mxu0 0.0
        %252 = vmatpush1.msra.mxu0 %v249
        %253 = vmatprep.subr.mxu0 0.0
        %254 = vmatpush1.msra.mxu0 0.0
        %255 = vmatprep.subr.mxu0 0.0
        %256 = vmatpush1.msra.mxu0 0.0
        %257 = vmatprep.subr.mxu0 0.0
        %258 = vmatpush1.msra.mxu0 0.0
        %259 = vmatprep.subr.mxu0 0.0
        %260 = vmatpush1.msra.mxu0 0.0
        %261 = vmatprep.subr.mxu0 0.0
        %262 = vmatpush1.msra.mxu0 0.0
        %263 = vmatprep.subr.mxu0 0.0
        %264 = vmatpush1.msra.mxu0 0.0
        %265 = vmatprep.subr.mxu0 0.0
        %266 = vmatpush1.msra.mxu0 0.0
        %267 = vmatprep.subr.mxu0 0.0
        %268 = vmatpush1.msra.mxu0 0.0
        %269 = vmatprep.subr.mxu0 0.0
        %270 = vmatpush1.msra.mxu0 0.0
        %271 = vmatprep.subr.mxu0 0.0
        %272 = vmatpush1.msra.mxu0 0.0
        %273 = vmatprep.subr.mxu0 0.0
        %274 = vmatpush1.msra.mxu0 0.0
        %275 = vmatprep.subr.mxu0 0.0
        %276 = vmatpush1.msra.mxu0 0.0
        %277 = vmatprep.subr.mxu0 0.0
        %278 = vmatpush1.msra.mxu0 0.0
        %279 = vmatprep.subr.mxu0 0.0
        %280 = vmatpush1.msra.mxu0 0.0
        %281 = vmatprep.subr.mxu0 0.0
        %282 = vmatpush1.msra.mxu0 0.0
        %283 = vmatprep.subr.mxu0 0.0
        %284 = vmatpush1.msra.mxu0 0.0
        %285 = vmatprep.subr.mxu0 0.0
        %286 = vmatpush1.msra.mxu0 0.0
        %287 = vmatprep.subr.mxu0 0.0
        %288 = vmatpush1.msra.mxu0 0.0
        %289 = vmatprep.subr.mxu0 0.0
        %290 = vmatpush1.msra.mxu0 0.0
        %291 = vmatprep.subr.mxu0 0.0
        %292 = vmatpush1.msra.mxu0 0.0
        %293 = vmatprep.subr.mxu0 0.0
        %294 = vmatpush1.msra.mxu0 0.0
        %295 = vmatprep.subr.mxu0 0.0
        %296 = vmatpush1.msra.mxu0 0.0
        %297 = vmatprep.subr.mxu0 0.0
        %298 = vmatpush1.msra.mxu0 0.0
        %299 = vmatprep.subr.mxu0 0.0
        %300 = vmatpush1.msra.mxu0 0.0
        %301 = vmatprep.subr.mxu0 0.0
        %302 = vmatpush1.msra.mxu0 0.0
        %303 = vmatprep.subr.mxu0 0.0
        %304 = vmatpush1.msra.mxu0 0.0
        %305 = vmatprep.subr.mxu0 0.0
        %306 = vmatpush1.msra.mxu0 0.0
        %307 = vmatprep.subr.mxu0 0.0
        %308 = vmatpush1.msra.mxu0 0.0
        %309 = vmatprep.subr.mxu0 0.0
        %310 = vmatpush1.msra.mxu0 0.0
        %311 = vmatprep.subr.mxu0 0.0
        %312 = vmatpush1.msra.mxu0 0.0
        %313 = vmatprep.subr.mxu0 0.0
        %314 = vmatpush1.msra.mxu0 0.0
        %315 = vmatprep.mubr.f32.mxu0 0.0
        %316 = vmatmul.mubr.f32.gmra.mrb[0].mxu0 %v245
        %v317 = vpop.f32.mrb[0].mxu0
        %v318 = vadd.f32 0.0, %v317
        %v319 = vpop.f32.mrb[0].mxu0
        %320 = vdwg.mxu0
        %v322 = vsel %vm243, %v237, 0
        %v325 = vsel %vm247, %v238, 0
        %327 = vmatprep.subr.mxu0 0.0
        %328 = vmatpush1.msra.mxu0 %v325
        %329 = vmatprep.subr.mxu0 0.0
        %330 = vmatpush1.msra.mxu0 0.0
        %331 = vmatprep.subr.mxu0 0.0
        %332 = vmatpush1.msra.mxu0 0.0
        %333 = vmatprep.subr.mxu0 0.0
        %334 = vmatpush1.msra.mxu0 0.0
        %335 = vmatprep.subr.mxu0 0.0
        %336 = vmatpush1.msra.mxu0 0.0
        %337 = vmatprep.subr.mxu0 0.0
        %338 = vmatpush1.msra.mxu0 0.0
        %339 = vmatprep.subr.mxu0 0.0
        %340 = vmatpush1.msra.mxu0 0.0
        %341 = vmatprep.subr.mxu0 0.0
        %342 = vmatpush1.msra.mxu0 0.0
        %343 = vmatprep.subr.mxu0 0.0
        %344 = vmatpush1.msra.mxu0 0.0
        %345 = vmatprep.subr.mxu0 0.0
        %346 = vmatpush1.msra.mxu0 0.0
        %347 = vmatprep.subr.mxu0 0.0
        %348 = vmatpush1.msra.mxu0 0.0
        %349 = vmatprep.subr.mxu0 0.0
        %350 = vmatpush1.msra.mxu0 0.0
        %351 = vmatprep.subr.mxu0 0.0
        %352 = vmatpush1.msra.mxu0 0.0
        %353 = vmatprep.subr.mxu0 0.0
        %354 = vmatpush1.msra.mxu0 0.0
        %355 = vmatprep.subr.mxu0 0.0
        %356 = vmatpush1.msra.mxu0 0.0
        %357 = vmatprep.subr.mxu0 0.0
        %358 = vmatpush1.msra.mxu0 0.0
        %359 = vmatprep.subr.mxu0 0.0
        %360 = vmatpush1.msra.mxu0 0.0
        %361 = vmatprep.subr.mxu0 0.0
        %362 = vmatpush1.msra.mxu0 0.0
        %363 = vmatprep.subr.mxu0 0.0
        %364 = vmatpush1.msra.mxu0 0.0
        %365 = vmatprep.subr.mxu0 0.0
        %366 = vmatpush1.msra.mxu0 0.0
        %367 = vmatprep.subr.mxu0 0.0
        %368 = vmatpush1.msra.mxu0 0.0
        %369 = vmatprep.subr.mxu0 0.0
        %370 = vmatpush1.msra.mxu0 0.0
        %371 = vmatprep.subr.mxu0 0.0
        %372 = vmatpush1.msra.mxu0 0.0
        %373 = vmatprep.subr.mxu0 0.0
        %374 = vmatpush1.msra.mxu0 0.0
        %375 = vmatprep.subr.mxu0 0.0
        %376 = vmatpush1.msra.mxu0 0.0
        %377 = vmatprep.subr.mxu0 0.0
        %378 = vmatpush1.msra.mxu0 0.0
        %379 = vmatprep.subr.mxu0 0.0
        %380 = vmatpush1.msra.mxu0 0.0
        %381 = vmatprep.subr.mxu0 0.0
        %382 = vmatpush1.msra.mxu0 0.0
        %383 = vmatprep.subr.mxu0 0.0
        %384 = vmatpush1.msra.mxu0 0.0
        %385 = vmatprep.subr.mxu0 0.0
        %386 = vmatpush1.msra.mxu0 0.0
        %387 = vmatprep.subr.mxu0 0.0
        %388 = vmatpush1.msra.mxu0 0.0
        %389 = vmatprep.subr.mxu0 0.0
        %390 = vmatpush1.msra.mxu0 0.0
        %391 = vmatprep.mubr.f32.mxu0 0.0
        %392 = vmatmul.mubr.f32.gmra.mrb[0].mxu0 %v322
        %v393 = vpop.f32.mrb[0].mxu0
        %v394 = vadd.f32 %v318, %v393
        %v395 = vpop.f32.mrb[0].mxu0
        %396 = vdwg.mxu0
        %s397 = scalar_lea.vmem [#allocation5], 16
        %v398 = vld [vmem:[%s397] sm:$0xff]
        %s399 = scalar_lea.vmem %s198, 8 [#allocation2]
        %v400 = vld [vmem:[%s399] sm:$0xf]
        %v402 = vsel %vm243, %v398, 0
        %v405 = vsel %vm247, %v400, 0
        %407 = vmatprep.subr.mxu0 0.0
        %408 = vmatpush1.msra.mxu0 %v405
        %409 = vmatprep.subr.mxu0 0.0
        %410 = vmatpush1.msra.mxu0 0.0
        %411 = vmatprep.subr.mxu0 0.0
        %412 = vmatpush1.msra.mxu0 0.0
        %413 = vmatprep.subr.mxu0 0.0
        %414 = vmatpush1.msra.mxu0 0.0
        %415 = vmatprep.subr.mxu0 0.0
        %416 = vmatpush1.msra.mxu0 0.0
        %417 = vmatprep.subr.mxu0 0.0
        %418 = vmatpush1.msra.mxu0 0.0
        %419 = vmatprep.subr.mxu0 0.0
        %420 = vmatpush1.msra.mxu0 0.0
        %421 = vmatprep.subr.mxu0 0.0
        %422 = vmatpush1.msra.mxu0 0.0
        %423 = vmatprep.subr.mxu0 0.0
        %424 = vmatpush1.msra.mxu0 0.0
        %425 = vmatprep.subr.mxu0 0.0
        %426 = vmatpush1.msra.mxu0 0.0
        %427 = vmatprep.subr.mxu0 0.0
        %428 = vmatpush1.msra.mxu0 0.0
        %429 = vmatprep.subr.mxu0 0.0
        %430 = vmatpush1.msra.mxu0 0.0
        %431 = vmatprep.subr.mxu0 0.0
        %432 = vmatpush1.msra.mxu0 0.0
        %433 = vmatprep.subr.mxu0 0.0
        %434 = vmatpush1.msra.mxu0 0.0
        %435 = vmatprep.subr.mxu0 0.0
        %436 = vmatpush1.msra.mxu0 0.0
        %437 = vmatprep.subr.mxu0 0.0
        %438 = vmatpush1.msra.mxu0 0.0
        %439 = vmatprep.subr.mxu0 0.0
        %440 = vmatpush1.msra.mxu0 0.0
        %441 = vmatprep.subr.mxu0 0.0
        %442 = vmatpush1.msra.mxu0 0.0
        %443 = vmatprep.subr.mxu0 0.0
        %444 = vmatpush1.msra.mxu0 0.0
        %445 = vmatprep.subr.mxu0 0.0
        %446 = vmatpush1.msra.mxu0 0.0
        %447 = vmatprep.subr.mxu0 0.0
        %448 = vmatpush1.msra.mxu0 0.0
        %449 = vmatprep.subr.mxu0 0.0
        %450 = vmatpush1.msra.mxu0 0.0
        %451 = vmatprep.subr.mxu0 0.0
        %452 = vmatpush1.msra.mxu0 0.0
        %453 = vmatprep.subr.mxu0 0.0
        %454 = vmatpush1.msra.mxu0 0.0
        %455 = vmatprep.subr.mxu0 0.0
        %456 = vmatpush1.msra.mxu0 0.0
        %457 = vmatprep.subr.mxu0 0.0
        %458 = vmatpush1.msra.mxu0 0.0
        %459 = vmatprep.subr.mxu0 0.0
        %460 = vmatpush1.msra.mxu0 0.0
        %461 = vmatprep.subr.mxu0 0.0
        %462 = vmatpush1.msra.mxu0 0.0
        %463 = vmatprep.subr.mxu0 0.0
        %464 = vmatpush1.msra.mxu0 0.0
        %465 = vmatprep.subr.mxu0 0.0
        %466 = vmatpush1.msra.mxu0 0.0
        %467 = vmatprep.subr.mxu0 0.0
        %468 = vmatpush1.msra.mxu0 0.0
        %469 = vmatprep.subr.mxu0 0.0
        %470 = vmatpush1.msra.mxu0 0.0
        %471 = vmatprep.mubr.f32.mxu0 0.0
        %472 = vmatmul.mubr.f32.gmra.mrb[0].mxu0 %v402
        %v473 = vpop.f32.mrb[0].mxu0
        %v474 = vadd.f32 0.0, %v473
        %v475 = vpop.f32.mrb[0].mxu0
        %476 = vdwg.mxu0
        %v477 = vadd.f32 %v394, %v474
        %v478 = vld [vmem:[%s222] sm:$0xff]
        %vm479 = vcmask 130048
        %v480 = vsel %vm479, %v477, 0.0
        %481 = vadd.xlane.f32.xlu0 %v480
        %v482 = vpop.xlane.xlu0 %481
        %v483 = vadd.f32 %v478, %v482
        %vm484 = vcmask 7168
        %485 = vst.msk [vmem:[%s222] sm:$0xff] %vm484, %v483
        %v486 = vld [vmem:[%s229] sm:$0xff]
        %v487 = vmul.f32 %v477, %v477
        %v488 = vsel %vm479, %v487, 0.0
        %489 = vadd.xlane.f32.xlu0 %v488
        %v490 = vpop.xlane.xlu0 %489
        %v491 = vadd.f32 %v486, %v490
        %492 = vst.msk [vmem:[%s229] sm:$0xff] %vm484, %v491
        %s493 = sand.u32 %s94, 1
        %s494 = scalar_lea.sflag [#allocation4], %s493
        %s495 = sand.u32 %s94, 1
        %s496 = smul.addr %s495, 8
        %s497 = scalar_lea.vmem [#allocation7], %s496
        %s498 = sand.u32 %s120, 1
        %s499 = scalar_lea.sflag [#allocation9], %s498
        %s500 = sand.u32 %s120, 1
        %s501 = smul.addr %s500, 8
        %s502 = scalar_lea.vmem [#allocation8], %s501
        // Predicated region
        $region41: #{conv1d_bn_relu.2} parent=27 // pred_check
          %p503 = pneg %p104
        $region42: #{conv1d_bn_relu.2} parent=27 // pred_check_branch
          %505 = sbr.rel (%p503) target = $region44
        $region43: #{conv1d_bn_relu.2} parent=27 // pred_region
          %s507 = ssub.s32 128, 128
          %508 = vsyncadd %s494, %s507
          %s509 = smul.addr %s29, 128
          %s510 = scalar_lea.hbm %s2, %s509
          %s512 = sshll.u32 %s497, 4
          %s513 = int_to_ptr.vmem [resolvable:$true] %s512
          %515 = dma.vmem_to_hbm [thread:$0]  %s513, 128, %s510, %s494
        $region44: #{conv1d_bn_relu.2} parent=27 // pred_fallthru
          _
        // Predicated region
        $region45: #{conv1d_bn_relu.2} parent=27 // pred_check
          %p516 = pneg %p130
        $region46: #{conv1d_bn_relu.2} parent=27 // pred_check_branch
          %518 = sbr.rel (%p516) target = $region48
        $region47: #{conv1d_bn_relu.2} parent=27 // pred_region
          %s520 = ssub.s32 128, 128
          %521 = vsyncadd %s499, %s520
          %s522 = smul.addr %s29, 128
          %s523 = scalar_lea.hbm %s3, %s522
          %s525 = sshll.u32 %s502, 4
          %s526 = int_to_ptr.vmem [resolvable:$true] %s525
          %528 = dma.vmem_to_hbm [thread:$0]  %s526, 128, %s523, %s499
        $region48: #{conv1d_bn_relu.2} parent=27 // pred_fallthru
          _
      $region28: #{conv1d_bn_relu.2} parent=5 // pred_fallthru
        _
      %p529 = scmp.le.s32.totalorder 2, %s20
      // Predicated region
      $region49: #{conv1d_bn_relu.2} parent=5 // pred_check
        %p530 = pneg %p529
      $region50: #{conv1d_bn_relu.2} parent=5 // pred_check_branch
        %532 = sbr.rel (%p530) target = $region52
      $region51: #{conv1d_bn_relu.2} parent=5 // pred_region
        %s533 = ssub.s32 %s20, 2
        // Predicated region
        $region53: #{conv1d_bn_relu.2} parent=51 // pred_check
          %p534 = pneg %p110
        $region54: #{conv1d_bn_relu.2} parent=51 // pred_check_branch
          %536 = sbr.rel (%p534) target = $region56
        $region55: #{conv1d_bn_relu.2} parent=51 // pred_region
          %s537 = sand.u32 %s95, 1
          %s538 = scalar_lea.sflag [#allocation4], %s537
          %s539 = sand.u32 %s95, 1
          %s540 = smul.addr %s539, 8
          %s541 = scalar_lea.vmem [#allocation7], %s540
          %542 = dma.done %s538, 128
        $region56: #{conv1d_bn_relu.2} parent=51 // pred_fallthru
          _
        // Predicated region
        $region57: #{conv1d_bn_relu.2} parent=51 // pred_check
          %p543 = pneg %p136
        $region58: #{conv1d_bn_relu.2} parent=51 // pred_check_branch
          %545 = sbr.rel (%p543) target = $region60
        $region59: #{conv1d_bn_relu.2} parent=51 // pred_region
          %s546 = sand.u32 %s121, 1
          %s547 = scalar_lea.sflag [#allocation9], %s546
          %s548 = sand.u32 %s121, 1
          %s549 = smul.addr %s548, 8
          %s550 = scalar_lea.vmem [#allocation8], %s549
          %551 = dma.done %s547, 128
        $region60: #{conv1d_bn_relu.2} parent=51 // pred_fallthru
          _
      $region52: #{conv1d_bn_relu.2} parent=5 // pred_fallthru
        _
    $region6: #{conv1d_bn_relu.2} parent=1 // loop_footer
      %s24 = sadd.s32 1, %s20
    $region7: #{conv1d_bn_relu.2} parent=1 // loop_footer_branch
      %19 = sbr.rel target = $region3
    $region8: #{conv1d_bn_relu.2} parent=1 // loop_exit
      _
    %552 = vsyncpa [#allocation3], 1
    %s553 = scalar_lea.sflag [#allocation3], 1
    %554 = vsyncpa %s553, 1
    %555 = vsyncpa [#allocation6], 1
    %556 = vsyncpa [#allocation4], 1
    %s557 = scalar_lea.sflag [#allocation4], 1
    %558 = vsyncpa %s557, 1
    %559 = vsyncpa [#allocation9], 1
    %s560 = scalar_lea.sflag [#allocation9], 1
    %561 = vsyncpa %s560, 1

// kernel: conv1d_bn_relu.3
$region0: #{conv1d_bn_relu.3}
  #allocation0 [shape = 'u32[]', space=smem, size = 0x4, offset = 0x4, fixed_abs, tag = 'smem constant byte address 0x4 - core index']
  #allocation1 [shape = 'u32[144,128]{1,0:T(1,128)}', space=vmem, size = 0x12000, scoped, tag = 'internal scratch']
  %s0 = inlined_call_operand.hbm [shape: f32[2,3,4,16], index: 0, kind: input, shape index: {}]
  %s1 = inlined_call_operand.hbm [shape: f32[3,8,4], index: 1, kind: input, shape index: {}]
  %s2 = inlined_call_operand.hbm [shape: f32[8,1], index: 2, kind: input, shape index: {}]
  %s3 = inlined_call_operand.hbm [shape: f32[8,1], index: 3, kind: input, shape index: {}]
  %s4 = inlined_call_operand.hbm [shape: f32[2,8,16], index: 4, kind: output, shape index: {}]
  %s5 = sld [smem:[#allocation0]]
  $region65: #{conv1d_bn_relu.3} parent=0
    _
  %s7 = ssub.s32 1, %s5
  %s8 = scalar_select 0, %s7, %s5
  $region1: #{conv1d_bn_relu.3} parent=0
    #allocation2 [shape = 'u8[12288]{0}', space=vmem, size = 0x3000, scoped, tag = 'input window, operand 0']
    #allocation3 [shape = 's32[2]{0}', space=sflag, size = 0x8, scoped, tag = 'scoped memory for conv1d_bn_relu.3']
    #allocation4 [shape = 's32[2]{0}', space=sflag, size = 0x8, scoped, tag = 'scoped memory for conv1d_bn_relu.3']
    #allocation5 [shape = 'u8[12288]{0}', space=vmem, size = 0x3000, scoped, tag = 'input window, operand 1, single buffered']
    #allocation6 [shape = 's32[1]{0}', space=sflag, size = 0x4, scoped, tag = 'scoped memory for conv1d_bn_relu.3']
    #allocation7 [shape = 'u8[4096]{0}', space=vmem, size = 0x1000, scoped, tag = 'input window, operand 2, single buffered']
    #allocation8 [shape = 'u8[4096]{0}', space=vmem, size = 0x1000, scoped, tag = 'input window, operand 3, single buffered']
    #allocation9 [shape = 's32[1]{0}', space=sflag, size = 0x4, scoped, tag = 'scoped memory for conv1d_bn_relu.3']
    #allocation10 [shape = 'u8[8192]{0}', space=vmem, size = 0x2000, scoped, tag = 'output window, operand 0']
    %9 = vsyncpa [#allocation3], 0
    %s10 = scalar_lea.sflag [#allocation3], 1
    %11 = vsyncpa %s10, 0
    %12 = vsyncpa [#allocation6], 0
    %13 = vsyncpa [#allocation9], 0
    %14 = vsyncpa [#allocation4], 0
    %s15 = scalar_lea.sflag [#allocation4], 1
    %16 = vsyncpa %s15, 0
    loop: start=0, step=1, limit=4
    $region2: #{conv1d_bn_relu.3} parent=1 // loop_pre_header
      _
    $region3: #{conv1d_bn_relu.3} parent=1 // loop_header
      %s18 = sphi 0, %s22
      %p19 = scmp.ge.s32.totalorder %s18, 4
      %s25 = sphi 0, %s37
      %s26 = sphi 0, %s33
      %s27 = sphi 0, %s25
      %s28 = sphi 0, %s26
      %s29 = sphi 0, %s27
      %s30 = sphi 0, %s28
      %s42 = sphi 0, %s44
      %s45 = sphi 0, %s42
      %s46 = sphi 0, %s45
      %s62 = sphi 0, %s46
      %s66 = sphi 0, %s66
      %s68 = sphi 0, %s66
      %s69 = sphi 0, %s68
      %s83 = sphi 0, %s69
      %s87 = sphi 0, %s87
      %s89 = sphi 0, %s87
      %s90 = sphi 0, %s89
      %s104 = sphi 0, %s90
      %s108 = sphi 0, %s108
      %s110 = sphi 0, %s108
      %s111 = sphi 0, %s110
      %s125 = sphi 0, %s111
      %s133 = sphi 0, %s135
      %s136 = sphi 0, %s133
      %s137 = sphi 0, %s136
      %s153 = sphi 0, %s137
    $region4: #{conv1d_bn_relu.3} parent=1 // loop_header_branch
      %21 = sbr.rel (%p19) target = $region8
    $region5: #{conv1d_bn_relu.3} parent=1 // loop_body
      %s23 = ssub.s32 %s18, 1
      %s24 = ssub.s32 %s18, 2
      %s31 = sadd.s32 1, %s26
      %p32 = scmp.ge.s32.totalorder %s31, 1
      %s33 = scalar_select %p32, 0, %s31
      %s34 = sadd.s32 1, %s25
      %s35 = scalar_select %p32, %s34, %s25
      %p36 = scmp.ge.s32.totalorder %s35, 2
      %s37 = scalar_select %p36, 0, %s35
      %s38 = ssub.s32 %s25, %s37
      %s39 = ssub.s32 %s26, %s33
      %s40 = sor.u32 %s38, %s39
      %p41 = scmp.eq.s32.totalorder %s40, 0
      %s43 = sadd.s32 %s42, 1
      %s44 = scalar_select %p41, %s42, %s43
      %p47 = pneg %p41
      %p48 = scmp.eq.s32.totalorder %s18, 1
      %p49 = por %p47, %p48
      %p50 = scmp.ne.s32.totalorder %s42, %s45
      %p51 = scmp.eq.s32.totalorder %s18, 0
      %p52 = por %p50, %p51
      %p53 = scmp.ne.s32.totalorder %s42, %s45
      %p54 = scmp.eq.s32.totalorder %s23, 1
      %p55 = por %p53, %p54
      %p56 = scmp.ne.s32.totalorder %s45, %s46
      %p57 = scmp.eq.s32.totalorder %s23, 0
      %p58 = por %p56, %p57
      %p59 = scmp.ne.s32.totalorder %s45, %s46
      %p60 = scmp.eq.s32.totalorder %s24, 1
      %p61 = por %p59, %p60
      %p63 = scmp.ne.s32.totalorder %s46, %s62
      %p64 = scmp.eq.s32.totalorder %s24, 0
      %p65 = por %p63, %p64
      %s67 = sadd.s32 %s66, 1
      %p70 = scmp.eq.s32.totalorder %s18, 1
      %p71 = scmp.ne.s32.totalorder %s66, %s68
      %p72 = scmp.eq.s32.totalorder %s18, 0
      %p73 = por %p71, %p72
      %p74 = scmp.ne.s32.totalorder %s66, %s68
      %p75 = scmp.eq.s32.totalorder %s23, 1
      %p76 = por %p74, %p75
      %p77 = scmp.ne.s32.totalorder %s68, %s69
      %p78 = scmp.eq.s32.totalorder %s23, 0
      %p79 = por %p77, %p78
      %p80 = scmp.ne.s32.totalorder %s68, %s69
      %p81 = scmp.eq.s32.totalorder %s24, 1
      %p82 = por %p80, %p81
      %p84 = scmp.ne.s32.totalorder %s69, %s83
      %p85 = scmp.eq.s32.totalorder %s24, 0
      %p86 = por %p84, %p85
      %s88 = sadd.s32 %s87, 1
      %p91 = scmp.eq.s32.totalorder %s18, 1
      %p92 = scmp.ne.s32.totalorder %s87, %s89
      %p93 = scmp.eq.s32.totalorder %s18, 0
      %p94 = por %p92, %p93
      %p95 = scmp.ne.s32.totalorder %s87, %s89
      %p96 = scmp.eq.s32.totalorder %s23, 1
      %p97 = por %p95, %p96
      %p98 = scmp.ne.s32.totalorder %s89, %s90
      %p99 = scmp.eq.s32.totalorder %s23, 0
      %p100 = por %p98, %p99
      %p101 = scmp.ne.s32.totalorder %s89, %s90
      %p102 = scmp.eq.s32.totalorder %s24, 1
      %p103 = por %p101, %p102
      %p105 = scmp.ne.s32.totalorder %s90, %s104
      %p106 = scmp.eq.s32.totalorder %s24, 0
      %p107 = por %p105, %p106
      %s109 = sadd.s32 %s108, 1
      %p112 = scmp.eq.s32.totalorder %s18, 1
      %p113 = scmp.ne.s32.totalorder %s108, %s110
      %p114 = scmp.eq.s32.totalorder %s18, 0
      %p115 = por %p113, %p114
      %p116 = scmp.ne.s32.totalorder %s108, %s110
      %p117 = scmp.eq.s32.totalorder %s23, 1
      %p118 = por %p116, %p117
      %p119 = scmp.ne.s32.totalorder %s110, %s111
      %p120 = scmp.eq.s32.totalorder %s23, 0
      %p121 = por %p119, %p120
      %p122 = scmp.ne.s32.totalorder %s110, %s111
      %p123 = scmp.eq.s32.totalorder %s24, 1
      %p124 = por %p122, %p123
      %p126 = scmp.ne.s32.totalorder %s111, %s125
      %p127 = scmp.eq.s32.totalorder %s24, 0
      %p128 = por %p126, %p127
      %s129 = ssub.s32 %s25, %s37
      %s130 = ssub.s32 %s26, %s33
      %s131 = sor.u32 %s129, %s130
      %p132 = scmp.eq.s32.totalorder %s131, 0
      %s134 = sadd.s32 %s133, 1
      %s135 = scalar_select %p132, %s133, %s134
      %p138 = pneg %p132
      %p139 = scmp.eq.s32.totalorder %s18, 1
      %p140 = por %p138, %p139
      %p141 = scmp.ne.s32.totalorder %s133, %s136
      %p142 = scmp.eq.s32.totalorder %s18, 0
      %p143 = por %p141, %p142
      %p144 = scmp.ne.s32.totalorder %s133, %s136
      %p145 = scmp.eq.s32.totalorder %s23, 1
      %p146 = por %p144, %p145
      %p147 = scmp.ne.s32.totalorder %s136, %s137
      %p148 = scmp.eq.s32.totalorder %s23, 0
      %p149 = por %p147, %p148
      %p150 = scmp.ne.s32.totalorder %s136, %s137
      %p151 = scmp.eq.s32.totalorder %s24, 1
      %p152 = por %p150, %p151
      %p154 = scmp.ne.s32.totalorder %s137, %s153
      %p155 = scmp.eq.s32.totalorder %s24, 0
      %p156 = por %p154, %p155
      %p157 = scmp.le.s32.totalorder 1, %s18
      %p158 = scmp.lt.s32.totalorder %s18, 3
      %p159 = pnand %p157, %p158
      %p160 = pneg %p159
      // Predicated region
      $region9: #{conv1d_bn_relu.3} parent=5 // pred_check
        _
      $region10: #{conv1d_bn_relu.3} parent=5 // pred_check_branch
        %162 = sbr.rel (%p159) target = $region12
      $region11: #{conv1d_bn_relu.3} parent=5 // pred_region
        %s163 = ssub.s32 %s18, 1
        // Predicated region
        $region13: #{conv1d_bn_relu.3} parent=11 // pred_check
          %p164 = pneg %p79
        $region14: #{conv1d_bn_relu.3} parent=11 // pred_check_branch
          %166 = sbr.rel (%p164) target = $region16
        $region15: #{conv1d_bn_relu.3} parent=11 // pred_region
          %s168 = ssub.s32 384, 384
          %169 = vsyncadd [#allocation6], %s168
          %s170 = sshll.u32 [#allocation5], 4
          %s171 = int_to_ptr.vmem [resolvable:$true] %s170
          %176 = dma.hbm_to_vmem [thread:$0]  %s1, 384, %s171, [#allocation6], 128, 128, 8
        $region16: #{conv1d_bn_relu.3} parent=11 // pred_fallthru
          _
        // Predicated region
        $region17: #{conv1d_bn_relu.3} parent=11 // pred_check
          %p177 = pneg %p100
        $region18: #{conv1d_bn_relu.3} parent=11 // pred_check_branch
          %179 = sbr.rel (%p177) target = $region20
        $region19: #{conv1d_bn_relu.3} parent=11 // pred_region
          %s181 = ssub.s32 128, 128
          %182 = vsyncadd [#allocation6], %s181
          %s184 = sshll.u32 [#allocation7], 4
          %s185 = int_to_ptr.vmem [resolvable:$true] %s184
          %187 = dma.hbm_to_vmem [thread:$0]  %s2, 128, %s185, [#allocation6]
        $region20: #{conv1d_bn_relu.3} parent=11 // pred_fallthru
          _
        // Predicated region
        $region21: #{conv1d_bn_relu.3} parent=11 // pred_check
          %p188 = pneg %p121
        $region22: #{conv1d_bn_relu.3} parent=11 // pred_check_branch
          %190 = sbr.rel (%p188) target = $region24
        $region23: #{conv1d_bn_relu.3} parent=11 // pred_region
          %s192 = ssub.s32 128, 128
          %193 = vsyncadd [#allocation9], %s192
          %s195 = sshll.u32 [#allocation8], 4
          %s196 = int_to_ptr.vmem [resolvable:$true] %s195
          %198 = dma.hbm_to_vmem [thread:$0]  %s3, 128, %s196, [#allocation9]
        $region24: #{conv1d_bn_relu.3} parent=11 // pred_fallthru
          _
      $region12: #{conv1d_bn_relu.3} parent=5 // pred_fallthru
        _
      %p199 = scmp.lt.s32.totalorder %s18, 2
      // Predicated region
      $region25: #{conv1d_bn_relu.3} parent=5 // pred_check
        %p200 = pneg %p199
      $region26: #{conv1d_bn_relu.3} parent=5 // pred_check_branch
        %202 = sbr.rel (%p200) target = $region28
      $region27: #{conv1d_bn_relu.3} parent=5 // pred_region
        // Predicated region
        $region29: #{conv1d_bn_relu.3} parent=27 // pred_check
          %p203 = pneg %p52
        $region30: #{conv1d_bn_relu.3} parent=27 // pred_check_branch
          %205 = sbr.rel (%p203) target = $region32
        $region31: #{conv1d_bn_relu.3} parent=27 // pred_region
          %s206 = sand.u32 %s42, 1
          %s207 = scalar_lea.sflag [#allocation3], %s206
          %s208 = sand.u32 %s42, 1
          %s209 = smul.addr %s208, 12
          %s210 = scalar_lea.vmem [#allocation2], %s209
          %s212 = ssub.s32 192, 192
          %213 = vsyncadd %s207, %s212
          %s214 = smul.addr %s25, 3
          %s215 = sadd.s32 %s26, %s214
          %s216 = smul.addr %s215, 64
          %s217 = scalar_lea.hbm %s0, %s216
          %s218 = sshll.u32 %s210, 4
          %s219 = int_to_ptr.vmem [resolvable:$true] %s218
          %224 = dma.hbm_to_vmem [thread:$0]  %s217, 192, %s219, %s207, 64, 64, 4
        $region32: #{conv1d_bn_relu.3} parent=27 // pred_fallthru
          _
      $region28: #{conv1d_bn_relu.3} parent=5 // pred_fallthru
        _
      %p225 = scmp.le.s32.totalorder 1, %s18
      %p226 = scmp.lt.s32.totalorder %s18, 3
      %p227 = pnand %p225, %p226
      %p228 = pneg %p227
      // Predicated region
      $region33: #{conv1d_bn_relu.3} parent=5 // pred_check
        _
      $region34: #{conv1d_bn_relu.3} parent=5 // pred_check_branch
        %230 = sbr.rel (%p227) target = $region36
      $region35: #{conv1d_bn_relu.3} parent=5 // pred_region
        %s231 = ssub.s32 %s18, 1
        %s232 = sand.u32 %s45, 1
        %s233 = scalar_lea.sflag [#allocation3], %s232
        %s234 = sand.u32 %s45, 1
        %s235 = smul.addr %s234, 12
        %s236 = scalar_lea.vmem [#allocation2], %s235
        // Predicated region
        $region37: #{conv1d_bn_relu.3} parent=35 // pred_check
          %p237 = pneg %p58
        $region38: #{conv1d_bn_relu.3} parent=35 // pred_check_branch
          %239 = sbr.rel (%p237) target = $region40
        $region39: #{conv1d_bn_relu.3} parent=35 // pred_region
          %240 = dma.done %s233, 192
        $region40: #{conv1d_bn_relu.3} parent=35 // pred_fallthru
          _
        // Predicated region
        $region41: #{conv1d_bn_relu.3} parent=35 // pred_check
          %p241 = pneg %p79
        $region42: #{conv1d_bn_relu.3} parent=35 // pred_check_branch
          %243 = sbr.rel (%p241) target = $region44
        $region43: #{conv1d_bn_relu.3} parent=35 // pred_region
          %244 = dma.done [#allocation6], 384
        $region44: #{conv1d_bn_relu.3} parent=35 // pred_fallthru
          _
        // Predicated region
        $region45: #{conv1d_bn_relu.3} parent=35 // pred_check
          %p245 = pneg %p100
        $region46: #{conv1d_bn_relu.3} parent=35 // pred_check_branch
          %247 = sbr.rel (%p245) target = $region48
        $region47: #{conv1d_bn_relu.3} parent=35 // pred_region
          %248 = dma.done [#allocation6], 128
        $region48: #{conv1d_bn_relu.3} parent=35 // pred_fallthru
          _
        // Predicated region
        $region49: #{conv1d_bn_relu.3} parent=35 // pred_check
          %p249 = pneg %p121
        $region50: #{conv1d_bn_relu.3} parent=35 // pred_check_branch
          %251 = sbr.rel (%p249) target = $region52
        $region51: #{conv1d_bn_relu.3} parent=35 // pred_region
          %252 = dma.done [#allocation9], 128
        $region52: #{conv1d_bn_relu.3} parent=35 // pred_fallthru
          _
        %s253 = sand.u32 %s45, 1
        %s254 = scalar_lea.sflag [#allocation3], %s253
        %s255 = sand.u32 %s45, 1
        %s256 = smul.addr %s255, 12
        %s257 = scalar_lea.vmem [#allocation2], %s256
        %p258 = pneg %p58
        %p259 = pneg %p55
        %p260 = pneg %p79
        %p261 = pneg %p76
        %p262 = pneg %p100
        %p263 = pneg %p97
        %p264 = pneg %p121
        %p265 = pneg %p118
        %p266 = pneg %p149
        %p267 = pneg %p146
        %s268 = sand.u32 %s136, 1
        %s269 = scalar_lea.sflag [#allocation4], %s268
        %s270 = sand.u32 %s136, 1
        %s271 = smul.addr %s270, 8
        %s272 = scalar_lea.vmem [#allocation10], %s271
        %v273 = vld [vmem:[#allocation5] sm:$0xff]
        %v274 = vld [vmem:[%s236] sm:$0xf]
        %s275 = scalar_lea.vmem [#allocation5], 8
        %v276 = vld [vmem:[%s275] sm:$0xff]
        %s277 = scalar_lea.vmem %s236, 4 [#allocation2]
        %v278 = vld [vmem:[%s277] sm:$0xf]
        %vm279 = vcmask 31744
        %v281 = vsel %vm279, %v276, 0
        %vm283 = vcmask 1043456
        %v285 = vsel %vm283, %v278, 0
        %287 = vmatprep.subr.mxu0 0.0
        %288 = vmatpush1.msra.mxu0 %v285
        %289 = vmatprep.subr.mxu0 0.0
        %290 = vmatpush1.msra.mxu0 0.0
        %291 = vmatprep.subr.mxu0 0.0
        %292 = vmatpush1.msra.mxu0 0.0
        %293 = vmatprep.subr.mxu0 0.0
        %294 = vmatpush1.msra.mxu0 0.0
        %295 = vmatprep.subr.mxu0 0.0
        %296 = vmatpush1.msra.mxu0 0.0
        %297 = vmatprep.subr.mxu0 0.0
        %298 = vmatpush1.msra.mxu0 0.0
        %299 = vmatprep.subr.mxu0 0.0
        %300 = vmatpush1.msra.mxu0 0.0
        %301 = vmatprep.subr.mxu0 0.0
        %302 = vmatpush1.msra.mxu0 0.0
        %303 = vmatprep.subr.mxu0 0.0
        %304 = vmatpush1.msra.mxu0 0.0
        %305 = vmatprep.subr.mxu0 0.0
        %306 = vmatpush1.msra.mxu0 0.0
        %307 = vmatprep.subr.mxu0 0.0
        %308 = vmatpush1.msra.mxu0 0.0
        %309 = vmatprep.subr.mxu0 0.0
        %310 = vmatpush1.msra.mxu0 0.0
        %311 = vmatprep.subr.mxu0 0.0
        %312 = vmatpush1.msra.mxu0 0.0
        %313 = vmatprep.subr.mxu0 0.0
        %314 = vmatpush1.msra.mxu0 0.0
        %315 = vmatprep.subr.mxu0 0.0
        %316 = vmatpush1.msra.mxu0 0.0
        %317 = vmatprep.subr.mxu0 0.0
        %318 = vmatpush1.msra.mxu0 0.0
        %319 = vmatprep.subr.mxu0 0.0
        %320 = vmatpush1.msra.mxu0 0.0
        %321 = vmatprep.subr.mxu0 0.0
        %322 = vmatpush1.msra.mxu0 0.0
        %323 = vmatprep.subr.mxu0 0.0
        %324 = vmatpush1.msra.mxu0 0.0
        %325 = vmatprep.subr.mxu0 0.0
        %326 = vmatpush1.msra.mxu0 0.0
        %327 = vmatprep.subr.mxu0 0.0
        %328 = vmatpush1.msra.mxu0 0.0
        %329 = vmatprep.subr.mxu0 0.0
        %330 = vmatpush1.msra.mxu0 0.0
        %331 = vmatprep.subr.mxu0 0.0
        %332 = vmatpush1.msra.mxu0 0.0
        %333 = vmatprep.subr.mxu0 0.0
        %334 = vmatpush1.msra.mxu0 0.0
        %335 = vmatprep.subr.mxu0 0.0
        %336 = vmatpush1.msra.mxu0 0.0
        %337 = vmatprep.subr.mxu0 0.0
        %338 = vmatpush1.msra.mxu0 0.0
        %339 = vmatprep.subr.mxu0 0.0
        %340 = vmatpush1.msra.mxu0 0.0
        %341 = vmatprep.subr.mxu0 0.0
        %342 = vmatpush1.msra.mxu0 0.0
        %343 = vmatprep.subr.mxu0 0.0
        %344 = vmatpush1.msra.mxu0 0.0
        %345 = vmatprep.subr.mxu0 0.0
        %346 = vmatpush1.msra.mxu0 0.0
        %347 = vmatprep.subr.mxu0 0.0
        %348 = vmatpush1.msra.mxu0 0.0
        %349 = vmatprep.subr.mxu0 0.0
        %350 = vmatpush1.msra.mxu0 0.0
        %351 = vmatprep.mubr.f32.mxu0 0.0
        %352 = vmatmul.mubr.f32.gmra.mrb[0].mxu0 %v281
        %v353 = vpop.f32.mrb[0].mxu0
        %v354 = vadd.f32 0.0, %v353
        %v355 = vpop.f32.mrb[0].mxu0
        %356 = vdwg.mxu0
        %v358 = vsel %vm279, %v273, 0
        %v361 = vsel %vm283, %v274, 0
        %363 = vmatprep.subr.mxu0 0.0
        %364 = vmatpush1.msra.mxu0 %v361
        %365 = vmatprep.subr.mxu0 0.0
        %366 = vmatpush1.msra.mxu0 0.0
        %367 = vmatprep.subr.mxu0 0.0
        %368 = vmatpush1.msra.mxu0 0.0
        %369 = vmatprep.subr.mxu0 0.0
        %370 = vmatpush1.msra.mxu0 0.0
        %371 = vmatprep.subr.mxu0 0.0
        %372 = vmatpush1.msra.mxu0 0.0
        %373 = vmatprep.subr.mxu0 0.0
        %374 = vmatpush1.msra.mxu0 0.0
        %375 = vmatprep.subr.mxu0 0.0
        %376 = vmatpush1.msra.mxu0 0.0
        %377 = vmatprep.subr.mxu0 0.0
        %378 = vmatpush1.msra.mxu0 0.0
        %379 = vmatprep.subr.mxu0 0.0
        %380 = vmatpush1.msra.mxu0 0.0
        %381 = vmatprep.subr.mxu0 0.0
        %382 = vmatpush1.msra.mxu0 0.0
        %383 = vmatprep.subr.mxu0 0.0
        %384 = vmatpush1.msra.mxu0 0.0
        %385 = vmatprep.subr.mxu0 0.0
        %386 = vmatpush1.msra.mxu0 0.0
        %387 = vmatprep.subr.mxu0 0.0
        %388 = vmatpush1.msra.mxu0 0.0
        %389 = vmatprep.subr.mxu0 0.0
        %390 = vmatpush1.msra.mxu0 0.0
        %391 = vmatprep.subr.mxu0 0.0
        %392 = vmatpush1.msra.mxu0 0.0
        %393 = vmatprep.subr.mxu0 0.0
        %394 = vmatpush1.msra.mxu0 0.0
        %395 = vmatprep.subr.mxu0 0.0
        %396 = vmatpush1.msra.mxu0 0.0
        %397 = vmatprep.subr.mxu0 0.0
        %398 = vmatpush1.msra.mxu0 0.0
        %399 = vmatprep.subr.mxu0 0.0
        %400 = vmatpush1.msra.mxu0 0.0
        %401 = vmatprep.subr.mxu0 0.0
        %402 = vmatpush1.msra.mxu0 0.0
        %403 = vmatprep.subr.mxu0 0.0
        %404 = vmatpush1.msra.mxu0 0.0
        %405 = vmatprep.subr.mxu0 0.0
        %406 = vmatpush1.msra.mxu0 0.0
        %407 = vmatprep.subr.mxu0 0.0
        %408 = vmatpush1.msra.mxu0 0.0
        %409 = vmatprep.subr.mxu0 0.0
        %410 = vmatpush1.msra.mxu0 0.0
        %411 = vmatprep.subr.mxu0 0.0
        %412 = vmatpush1.msra.mxu0 0.0
        %413 = vmatprep.subr.mxu0 0.0
        %414 = vmatpush1.msra.mxu0 0.0
        %415 = vmatprep.subr.mxu0 0.0
        %416 = vmatpush1.msra.mxu0 0.0
        %417 = vmatprep.subr.mxu0 0.0
        %418 = vmatpush1.msra.mxu0 0.0
        %419 = vmatprep.subr.mxu0 0.0
        %420 = vmatpush1.msra.mxu0 0.0
        %421 = vmatprep.subr.mxu0 0.0
        %422 = vmatpush1.msra.mxu0 0.0
        %423 = vmatprep.subr.mxu0 0.0
        %424 = vmatpush1.msra.mxu0 0.0
        %425 = vmatprep.subr.mxu0 0.0
        %426 = vmatpush1.msra.mxu0 0.0
        %427 = vmatprep.mubr.f32.mxu0 0.0
        %428 = vmatmul.mubr.f32.gmra.mrb[0].mxu0 %v358
        %v429 = vpop.f32.mrb[0].mxu0
        %v430 = vadd.f32 %v354, %v429
        %v431 = vpop.f32.mrb[0].mxu0
        %432 = vdwg.mxu0
        %s433 = scalar_lea.vmem [#allocation5], 16
        %v434 = vld [vmem:[%s433] sm:$0xff]
        %s435 = scalar_lea.vmem %s236, 8 [#allocation2]
        %v436 = vld [vmem:[%s435] sm:$0xf]
        %v438 = vsel %vm279, %v434, 0
        %v441 = vsel %vm283, %v436, 0
        %443 = vmatprep.subr.mxu0 0.0
        %444 = vmatpush1.msra.mxu0 %v441
        %445 = vmatprep.subr.mxu0 0.0
        %446 = vmatpush1.msra.mxu0 0.0
        %447 = vmatprep.subr.mxu0 0.0
        %448 = vmatpush1.msra.mxu0 0.0
        %449 = vmatprep.subr.mxu0 0.0
        %450 = vmatpush1.msra.mxu0 0.0
        %451 = vmatprep.subr.mxu0 0.0
        %452 = vmatpush1.msra.mxu0 0.0
        %453 = vmatprep.subr.mxu0 0.0
        %454 = vmatpush1.msra.mxu0 0.0
        %455 = vmatprep.subr.mxu0 0.0
        %456 = vmatpush1.msra.mxu0 0.0
        %457 = vmatprep.subr.mxu0 0.0
        %458 = vmatpush1.msra.mxu0 0.0
        %459 = vmatprep.subr.mxu0 0.0
        %460 = vmatpush1.msra.mxu0 0.0
        %461 = vmatprep.subr.mxu0 0.0
        %462 = vmatpush1.msra.mxu0 0.0
        %463 = vmatprep.subr.mxu0 0.0
        %464 = vmatpush1.msra.mxu0 0.0
        %465 = vmatprep.subr.mxu0 0.0
        %466 = vmatpush1.msra.mxu0 0.0
        %467 = vmatprep.subr.mxu0 0.0
        %468 = vmatpush1.msra.mxu0 0.0
        %469 = vmatprep.subr.mxu0 0.0
        %470 = vmatpush1.msra.mxu0 0.0
        %471 = vmatprep.subr.mxu0 0.0
        %472 = vmatpush1.msra.mxu0 0.0
        %473 = vmatprep.subr.mxu0 0.0
        %474 = vmatpush1.msra.mxu0 0.0
        %475 = vmatprep.subr.mxu0 0.0
        %476 = vmatpush1.msra.mxu0 0.0
        %477 = vmatprep.subr.mxu0 0.0
        %478 = vmatpush1.msra.mxu0 0.0
        %479 = vmatprep.subr.mxu0 0.0
        %480 = vmatpush1.msra.mxu0 0.0
        %481 = vmatprep.subr.mxu0 0.0
        %482 = vmatpush1.msra.mxu0 0.0
        %483 = vmatprep.subr.mxu0 0.0
        %484 = vmatpush1.msra.mxu0 0.0
        %485 = vmatprep.subr.mxu0 0.0
        %486 = vmatpush1.msra.mxu0 0.0
        %487 = vmatprep.subr.mxu0 0.0
        %488 = vmatpush1.msra.mxu0 0.0
        %489 = vmatprep.subr.mxu0 0.0
        %490 = vmatpush1.msra.mxu0 0.0
        %491 = vmatprep.subr.mxu0 0.0
        %492 = vmatpush1.msra.mxu0 0.0
        %493 = vmatprep.subr.mxu0 0.0
        %494 = vmatpush1.msra.mxu0 0.0
        %495 = vmatprep.subr.mxu0 0.0
        %496 = vmatpush1.msra.mxu0 0.0
        %497 = vmatprep.subr.mxu0 0.0
        %498 = vmatpush1.msra.mxu0 0.0
        %499 = vmatprep.subr.mxu0 0.0
        %500 = vmatpush1.msra.mxu0 0.0
        %501 = vmatprep.subr.mxu0 0.0
        %502 = vmatpush1.msra.mxu0 0.0
        %503 = vmatprep.subr.mxu0 0.0
        %504 = vmatpush1.msra.mxu0 0.0
        %505 = vmatprep.subr.mxu0 0.0
        %506 = vmatpush1.msra.mxu0 0.0
        %507 = vmatprep.mubr.f32.mxu0 0.0
        %508 = vmatmul.mubr.f32.gmra.mrb[0].mxu0 %v438
        %v509 = vpop.f32.mrb[0].mxu0
        %v510 = vadd.f32 0.0, %v509
        %v511 = vpop.f32.mrb[0].mxu0
        %512 = vdwg.mxu0
        %v513 = vadd.f32 %v430, %v510
        %v514 = vld [vmem:[#allocation7] sm:$0xff]
        %516 = vset.pattern.permute.xlu0 0
        %517 = vperm.xlu0 %516, %v514
        %v518 = vpop.permute.xlu0 %517
        %v520 = vmul.f32 %v513, %v518
        %v521 = vld [vmem:[#allocation8] sm:$0xff]
        %523 = vset.pattern.permute.xlu0 0
        %524 = vperm.xlu0 %523, %v521
        %v525 = vpop.permute.xlu0 %524
        %v527 = vadd.f32 %v520, %v525
        %v528 = vmax.f32 %v527, 0.0
        %vm529 = vcmask 130048
        %530 = vst.msk [vmem:[%s272] sm:$0xff] %vm529, %v528
        %s531 = sand.u32 %s136, 1
        %s532 = scalar_lea.sflag [#allocation4], %s531
        %s533 = sand.u32 %s136, 1
        %s534 = smul.addr %s533, 8
        %s535 = scalar_lea.vmem [#allocation10], %s534
        // Predicated region
        $region53: #{conv1d_bn_relu.3} parent=35 // pred_check
          %p536 = pneg %p146
        $region54: #{conv1d_bn_relu.3} parent=35 // pred_check_branch
          %538 = sbr.rel (%p536) target = $region56
        $region55: #{conv1d_bn_relu.3} parent=35 // pred_region
          %s540 = ssub.s32 128, 128
          %541 = vsyncadd %s532, %s540
          %s542 = sadd.s32 %s28, %s27
          %s543 = smul.addr %s542, 128
          %s544 = scalar_lea.hbm %s4, %s543
          %s546 = sshll.u32 %s535, 4
          %s547 = int_to_ptr.vmem [resolvable:$true] %s546
          %549 = dma.vmem_to_hbm [thread:$0]  %s547, 128, %s544, %s532
        $region56: #{conv1d_bn_relu.3} parent=35 // pred_fallthru
          _
      $region36: #{conv1d_bn_relu.3} parent=5 // pred_fallthru
        _
      %p550 = scmp.le.s32.totalorder 2, %s18
      // Predicated region
      $region57: #{conv1d_bn_relu.3} parent=5 // pred_check
        %p551 = pneg %p550
      $region58: #{conv1d_bn_relu.3} parent=5 // pred_check_branch
        %553 = sbr.rel (%p551) target = $region60
      $region59: #{conv1d_bn_relu.3} parent=5 // pred_region
        %s554 = ssub.s32 %s18, 2
        // Predicated region
        $region61: #{conv1d_bn_relu.3} parent=59 // pred_check
          %p555 = pneg %p152
        $region62: #{conv1d_bn_relu.3} parent=59 // pred_check_branch
          %557 = sbr.rel (%p555) target = $region64
        $region63: #{conv1d_bn_relu.3} parent=59 // pred_region
          %s558 = sand.u32 %s137, 1
          %s559 = scalar_lea.sflag [#allocation4], %s558
          %s560 = sand.u32 %s137, 1
          %s561 = smul.addr %s560, 8
          %s562 = scalar_lea.vmem [#allocation10], %s561
          %563 = dma.done %s559, 128
        $region64: #{conv1d_bn_relu.3} parent=59 // pred_fallthru
          _
      $region60: #{conv1d_bn_relu.3} parent=5 // pred_fallthru
        _
    $region6: #{conv1d_bn_relu.3} parent=1 // loop_footer
      %s22 = sadd.s32 1, %s18
    $region7: #{conv1d_bn_relu.3} parent=1 // loop_footer_branch
      %17 = sbr.rel target = $region3
    $region8: #{conv1d_bn_relu.3} parent=1 // loop_exit
      _
    %564 = vsyncpa [#allocation3], 1
    %s565 = scalar_lea.sflag [#allocation3], 1
    %566 = vsyncpa %s565, 1
    %567 = vsyncpa [#allocation6], 1
    %568 = vsyncpa [#allocation9], 1
    %569 = vsyncpa [#allocation4], 1
    %s570 = scalar_lea.sflag [#allocation4], 1
    %571 = vsyncpa %s570, 1

</llo_original>
